<compile_context>
chip_gen: v6e
topology: v6e:2x2x1
jax: 0.10.0
libtpu: 0.0.40
codegen_flags: <defaults>
</compile_context>

<pallas_src>
import functools
import math

import jax
import jax.numpy as jnp
from jax.experimental import pallas as pl
from jax.experimental.pallas import tpu as pltpu


def _round_up(x, m):
    return ((x + m - 1) // m) * m


def _pad2d(x, rows, cols):
    return jnp.pad(x, ((0, rows - x.shape[0]), (0, cols - x.shape[1])))


# ----------------------------------------------------------------------------
# Kernel: fused VAE encoder + reparameterization + decoder for one batch tile.
# Activations are (batch_tile, features); features map to the 128-lane axis.
# Linear weights are stored pre-transposed as (in, out) so we compute x @ W.
# Contraction (input) feature dims are unpadded; output dims are 128-padded.
# ----------------------------------------------------------------------------
def _vae_kernel(state_ref, action_ref, eps_ref,
                we1s_ref, we1a_ref, we2_ref, wml_ref,
                wd1s_ref, wd1z_ref, wd2_ref, wd3_ref,
                bias_ref,
                u_ref, mean_ref, std_ref, *, Hp, Lp, Ap):
    f32 = jnp.float32
    bf16 = jnp.bfloat16

    st = state_ref[...]      # (TB, D)  bf16, unpadded feature dim
    ac = action_ref[...]     # (TB, A)  bf16, unpadded feature dim

    be1 = bias_ref[0:1, :Hp]
    be2 = bias_ref[1:2, :Hp]
    bml = bias_ref[2:3, :2 * Lp]
    bd1 = bias_ref[3:4, :Hp]
    bd2 = bias_ref[4:5, :Hp]
    bd3 = bias_ref[5:6, :Ap]

    # z = relu(encoder1(cat([state, action])))   (split-weight form of the concat)
    h = (jnp.dot(st, we1s_ref[...], preferred_element_type=f32)
         + jnp.dot(ac, we1a_ref[...], preferred_element_type=f32)
         + be1)
    h = jnp.maximum(h, 0.0).astype(bf16)

    # z = relu(encoder2(z))
    h = jnp.dot(h, we2_ref[...], preferred_element_type=f32) + be2
    h = jnp.maximum(h, 0.0).astype(bf16)

    # Fused mean|log_std head, clamp, exp, reparameterize (VPU/EUP, free slots).
    ml = jnp.dot(h, wml_ref[...], preferred_element_type=f32) + bml
    mean = ml[:, :Lp]
    log_std = jnp.clip(ml[:, Lp:], -4.0, 15.0)
    std = jnp.exp(log_std)                               # EUP
    z = mean + std * eps_ref[...]                        # eps stays f32

    # u = decoder3(relu(decoder2(relu(decoder1(cat([state, z]))))))
    d = (jnp.dot(st, wd1s_ref[...], preferred_element_type=f32)
         + jnp.dot(z.astype(bf16), wd1z_ref[...], preferred_element_type=f32)
         + bd1)
    d = jnp.maximum(d, 0.0).astype(bf16)
    d = jnp.dot(d, wd2_ref[...], preferred_element_type=f32) + bd2
    d = jnp.maximum(d, 0.0).astype(bf16)
    u = jnp.dot(d, wd3_ref[...], preferred_element_type=f32) + bd3

    u_ref[...] = u.astype(u_ref.dtype)
    mean_ref[...] = mean.astype(mean_ref.dtype)
    std_ref[...] = std.astype(std_ref.dtype)


_WEIGHT_ORDER = ("we1_s", "we1_a", "we2", "wml",
                 "wd1_s", "wd1_z", "wd2", "wd3", "biases")


def _vae_mlp(params, dims, state_p, action_p, eps_p, tb, single_buffer_weights):
    """pallas_call wrapper: batch-tiled grid, weights VMEM-resident."""
    Bp = state_p.shape[0]
    D, A = dims["input_dim"], dims["action_dim"]
    Hp, Lp, Ap = dims["Hp"], dims["Lp"], dims["Ap"]
    grid = (Bp // tb,)

    def row_spec(width):
        return pl.BlockSpec((tb, width), lambda i: (i, 0))

    def weight_spec(shape):
        # Grid-invariant blocks: a single VMEM buffer is enough.
        if single_buffer_weights and hasattr(pl, "Buffered"):
            try:
                return pl.BlockSpec(shape, lambda i: (0, 0),
                                    pipeline_mode=pl.Buffered(1))
            except TypeError:
                pass
        return pl.BlockSpec(shape, lambda i: (0, 0))

    weight_args = [params[k] for k in _WEIGHT_ORDER]
    weight_specs = [weight_spec(params[k].shape) for k in _WEIGHT_ORDER]
    weight_bytes = sum(int(math.prod(params[k].shape)) * params[k].dtype.itemsize
                       for k in _WEIGHT_ORDER)

    # Cost model: two split matmuls + 2 square matmuls + fused head + decoder3.
    flops = 2 * Bp * (D * Hp + A * Hp        # encoder1 (split)
                      + Hp * Hp              # encoder2
                      + Hp * 2 * Lp          # fused mean|log_std head
                      + D * Hp + Lp * Hp     # decoder1 (split)
                      + Hp * Hp              # decoder2
                      + Hp * Ap)             # decoder3
    bytes_accessed = (weight_bytes
                      + Bp * (D + A) * 2 + Bp * Lp * 4       # bf16/f32 inputs
                      + Bp * (Ap + 2 * Lp) * 4)              # f32 outputs
    cost = pl.CostEstimate(flops=int(flops),
                           transcendentals=int(Bp * Lp),
                           bytes_accessed=int(bytes_accessed))

    # VMEM budget: resident weights (x1 single-buffered, x2 otherwise),
    # double-buffered activation tiles, f32 intermediates, headroom.
    wmult = 1 if single_buffer_weights else 2
    tile_in = tb * (D + A) * 2 + tb * Lp * 4
    tile_out = tb * (Ap + 2 * Lp) * 4
    scratch = tb * (2 * Hp + 4 * Lp) * 4
    vmem_limit = min(int(wmult * weight_bytes + 2 * (tile_in + tile_out)
                         + scratch) + (8 << 20),
                     128 * 1024 * 1024)

    out_shapes = (jax.ShapeDtypeStruct((Bp, Ap), jnp.float32),   # u
                  jax.ShapeDtypeStruct((Bp, Lp), jnp.float32),   # mean
                  jax.ShapeDtypeStruct((Bp, Lp), jnp.float32))   # std

    kernel = functools.partial(_vae_kernel, Hp=Hp, Lp=Lp, Ap=Ap)

    return pl.pallas_call(
        kernel,
        out_shape=out_shapes,
        grid=grid,
        in_specs=[row_spec(D), row_spec(A), row_spec(Lp)] + weight_specs,
        out_specs=(row_spec(Ap), row_spec(Lp), row_spec(Lp)),
        compiler_params=pltpu.CompilerParams(
            dimension_semantics=("parallel",),
            vmem_limit_bytes=vmem_limit),
        cost_estimate=cost,
    )(state_p, action_p, eps_p, *weight_args)


def vae_forward(params, dims, data, action, eps):
    """VAE.forward(data, action) -> (state, u, mean, std)."""
    batch = action.shape[0]

    # get_state (attention is None): embedding gathers + reshape + concat (glue).
    user_repr = params["user_embeds"][data["user"]]                 # (B, d)
    item_repr = params["item_embeds"][data["item"]].reshape(batch, -1)
    state = jnp.concatenate([user_repr, item_repr], axis=1)         # (B, input_dim) f32

    A, L, Lp = dims["action_dim"], dims["latent_dim"], dims["Lp"]

    # Batch tile: multiple of 16 (bf16 sublane packing), up to 512, and >= 2
    # grid steps when the batch allows it (v7x megacore sharding).
    if batch >= 32:
        tb = min(512, _round_up((batch + 1) // 2, 16))
    else:
        tb = _round_up(batch, 16)
    Bp = _round_up(batch, tb)
    pad_b = Bp - batch

    # Cast + row-pad only (no feature padding of the contraction dims).
    state_p = jnp.pad(state.astype(jnp.bfloat16), ((0, pad_b), (0, 0)))
    action_p = jnp.pad(action.astype(jnp.bfloat16), ((0, pad_b), (0, 0)))
    eps_p = jnp.pad(eps.astype(jnp.float32), ((0, pad_b), (0, Lp - L)))

    try:
        u_p, mean_p, std_p = _vae_mlp(params, dims, state_p, action_p, eps_p,
                                      tb, single_buffer_weights=True)
    except Exception:
        # Fallback if this JAX/Mosaic build rejects Buffered(1) pipeline mode.
        u_p, mean_p, std_p = _vae_mlp(params, dims, state_p, action_p, eps_p,
                                      tb, single_buffer_weights=False)

    return (state,
            u_p[:batch, :A],
            mean_p[:batch, :L],
            std_p[:batch, :L])


# ----------------------------------------------------------------------------
# Parameter init (PyTorch nn.Linear-style U(-1/sqrt(fan_in), 1/sqrt(fan_in))),
# weights pre-transposed to (in, out); only output dims padded to 128 lanes,
# weights bf16, biases packed into a single (8, BW) f32 array.
# Only the layers VAE.forward actually uses (fc1/fc2/fc3 are never called).
# ----------------------------------------------------------------------------
def init_vae_params(key, n_users, n_items, d_embed, seq_len,
                    hidden_size, action_dim, latent_dim):
    input_dim = d_embed + seq_len * d_embed
    Hp = _round_up(hidden_size, 128)
    Lp = _round_up(latent_dim, 128)
    Ap = _round_up(action_dim, 128)
    BW = max(Hp, 2 * Lp, Ap)

    keys = jax.random.split(key, 9)
    user_embeds = jax.random.normal(keys[0], (n_users, d_embed), jnp.float32)
    item_embeds = jax.random.normal(keys[1], (n_items, d_embed), jnp.float32)

    def linear(k, fan_in, fan_out):
        kw, kb = jax.random.split(k)
        bound = 1.0 / math.sqrt(fan_in)
        w = jax.random.uniform(kw, (fan_in, fan_out), jnp.float32, -bound, bound)
        b = jax.random.uniform(kb, (fan_out,), jnp.float32, -bound, bound)
        return w, b

    def padvec(v, width):
        return jnp.pad(v, (0, width - v.shape[0]))

    # encoder1: Linear(input_dim + action_dim, H) -> split rows (state | action)
    w_e1, b_e1 = linear(keys[2], input_dim + action_dim, hidden_size)
    we1_s = _pad2d(w_e1[:input_dim], input_dim, Hp).astype(jnp.bfloat16)
    we1_a = _pad2d(w_e1[input_dim:], action_dim, Hp).astype(jnp.bfloat16)

    w_e2, b_e2 = linear(keys[3], hidden_size, hidden_size)
    we2 = _pad2d(w_e2, Hp, Hp).astype(jnp.bfloat16)

    # Fused mean | log_std head: (Hp, 2*Lp).
    w_m, b_m = linear(keys[4], hidden_size, latent_dim)
    w_l, b_l = linear(keys[5], hidden_size, latent_dim)
    wml = jnp.concatenate([_pad2d(w_m, Hp, Lp), _pad2d(w_l, Hp, Lp)],
                          axis=1).astype(jnp.bfloat16)

    # decoder1: Linear(input_dim + latent_dim, H) -> split rows (state | z)
    w_d1, b_d1 = linear(keys[6], input_dim + latent_dim, hidden_size)
    wd1_s = _pad2d(w_d1[:input_dim], input_dim, Hp).astype(jnp.bfloat16)
    wd1_z = _pad2d(w_d1[input_dim:], Lp, Hp).astype(jnp.bfloat16)

    w_d2, b_d2 = linear(keys[7], hidden_size, hidden_size)
    wd2 = _pad2d(w_d2, Hp, Hp).astype(jnp.bfloat16)

    w_d3, b_d3 = linear(keys[8], hidden_size, action_dim)
    wd3 = _pad2d(w_d3, Hp, Ap).astype(jnp.bfloat16)

    # Pack all biases into a single (8, BW) f32 array (one sublane tile).
    bml_row = jnp.concatenate([padvec(b_m, Lp), padvec(b_l, Lp)])
    bias_rows = [padvec(b_e1, BW), padvec(b_e2, BW), padvec(bml_row, BW),
                 padvec(b_d1, BW), padvec(b_d2, BW), padvec(b_d3, BW),
                 jnp.zeros((BW,), jnp.float32), jnp.zeros((BW,), jnp.float32)]
    biases = jnp.stack(bias_rows).astype(jnp.float32)

    params = dict(user_embeds=user_embeds, item_embeds=item_embeds,
                  we1_s=we1_s, we1_a=we1_a, we2=we2, wml=wml,
                  wd1_s=wd1_s, wd1_z=wd1_z, wd2=wd2, wd3=wd3,
                  biases=biases)
    dims = dict(input_dim=input_dim, action_dim=action_dim,
                latent_dim=latent_dim, hidden_size=hidden_size,
                Hp=Hp, Lp=Lp, Ap=Ap, BW=BW)
    return params, dims


# ----------------------------------------------------------------------------
# Pure-JAX reference (identical bf16/f32 arithmetic, no Pallas).
# ----------------------------------------------------------------------------
def _reference_forward(params, dims, data, action, eps):
    f32, bf16 = jnp.float32, jnp.bfloat16
    batch = action.shape[0]
    Hp, Lp, Ap = dims["Hp"], dims["Lp"], dims["Ap"]
    A, L = dims["action_dim"], dims["latent_dim"]

    user_repr = params["user_embeds"][data["user"]]
    item_repr = params["item_embeds"][data["item"]].reshape(batch, -1)
    state = jnp.concatenate([user_repr, item_repr], axis=1)

    st = state.astype(bf16)
    ac = action.astype(bf16)
    biases = params["biases"]
    be1 = biases[0:1, :Hp]
    be2 = biases[1:2, :Hp]
    bml = biases[2:3, :2 * Lp]
    bd1 = biases[3:4, :Hp]
    bd2 = biases[4:5, :Hp]
    bd3 = biases[5:6, :Ap]

    h = (jnp.dot(st, params["we1_s"], preferred_element_type=f32)
         + jnp.dot(ac, params["we1_a"], preferred_element_type=f32) + be1)
    h = jnp.maximum(h, 0.0).astype(bf16)
    h = jnp.dot(h, params["we2"], preferred_element_type=f32) + be2
    h = jnp.maximum(h, 0.0).astype(bf16)

    ml = jnp.dot(h, params["wml"], preferred_element_type=f32) + bml
    mean = ml[:, :Lp]
    log_std = jnp.clip(ml[:, Lp:], -4.0, 15.0)
    std = jnp.exp(log_std)
    eps_p = jnp.pad(eps.astype(f32), ((0, 0), (0, Lp - L)))
    z = mean + std * eps_p

    d = (jnp.dot(st, params["wd1_s"], preferred_element_type=f32)
         + jnp.dot(z.astype(bf16), params["wd1_z"], preferred_element_type=f32)
         + bd1)
    d = jnp.maximum(d, 0.0).astype(bf16)
    d = jnp.dot(d, params["wd2"], preferred_element_type=f32) + bd2
    d = jnp.maximum(d, 0.0).astype(bf16)
    u = jnp.dot(d, params["wd3"], preferred_element_type=f32) + bd3

    return state, u[:, :A], mean[:, :L], std[:, :L]


if __name__ == "__main__":
    # Small shapes consistent with the module.
    batch = 4
    n_users, n_items = 10, 50
    d_embed = 16
    seq_len = 4
    hidden_size = 32
    action_dim = 20
    latent_dim = 8

    key = jax.random.PRNGKey(0)
    k_params, k_user, k_item, k_action, k_eps = jax.random.split(key, 5)

    params, dims = init_vae_params(k_params, n_users, n_items, d_embed,
                                   seq_len, hidden_size, action_dim, latent_dim)

    data = {
        "user": jax.random.randint(k_user, (batch,), 0, n_users, jnp.int32),
        "item": jax.random.randint(k_item, (batch, seq_len), 1, n_items, jnp.int32),
    }
    action = jax.random.normal(k_action, (batch, action_dim), jnp.float32)
    eps = jax.random.normal(k_eps, (batch, latent_dim), jnp.float32)  # randn_like(std)

    state, u, mean, std = vae_forward(params, dims, data, action, eps)
    jax.block_until_ready((state, u, mean, std))

    r_state, r_u, r_mean, r_std = _reference_forward(params, dims, data, action, eps)

    assert state.shape == (batch, dims["input_dim"])
    assert u.shape == (batch, action_dim)
    assert mean.shape == (batch, latent_dim)
    assert std.shape == (batch, latent_dim)
    assert jnp.allclose(state, r_state, atol=1e-5, rtol=1e-5)
    assert jnp.allclose(mean, r_mean, atol=1e-2, rtol=1e-2)
    assert jnp.allclose(std, r_std, atol=1e-2, rtol=1e-2)
    assert jnp.allclose(u, r_u, atol=1e-2, rtol=1e-2)

    print("KERNEL_OK")
</pallas_src>

<mosaic_0001>
module attributes {stable_mosaic.version = 11 : i64} {
  func.func @_vae_kernel(%arg0: i32, %arg1: memref<16x80xbf16, #tpu.memory_space<vmem>>, %arg2: memref<16x20xbf16, #tpu.memory_space<vmem>>, %arg3: memref<16x128xf32, #tpu.memory_space<vmem>>, %arg4: memref<80x128xbf16, #tpu.memory_space<vmem>>, %arg5: memref<20x128xbf16, #tpu.memory_space<vmem>>, %arg6: memref<128x128xbf16, #tpu.memory_space<vmem>>, %arg7: memref<128x256xbf16, #tpu.memory_space<vmem>>, %arg8: memref<80x128xbf16, #tpu.memory_space<vmem>>, %arg9: memref<128x128xbf16, #tpu.memory_space<vmem>>, %arg10: memref<128x128xbf16, #tpu.memory_space<vmem>>, %arg11: memref<128x128xbf16, #tpu.memory_space<vmem>>, %arg12: memref<8x256xf32, #tpu.memory_space<vmem>>, %arg13: memref<16x128xf32, #tpu.memory_space<vmem>>, %arg14: memref<16x128xf32, #tpu.memory_space<vmem>>, %arg15: memref<16x128xf32, #tpu.memory_space<vmem>>) attributes {dimension_semantics = [#tpu.dimension_semantics<parallel>], iteration_bounds = array<i64: 1>, scalar_prefetch = 0 : i64, scratch_operands = 0 : i64, tpu.core_type = #tpu.core_type<tc>, window_params = [{transform_indices = @transform_0, window_bounds = array<i64: 16, 80>}, {transform_indices = @transform_1, window_bounds = array<i64: 16, 20>}, {transform_indices = @transform_2, window_bounds = array<i64: 16, 128>}, {pipeline_mode = #tpu.pipeline_mode<synchronous>, transform_indices = @transform_3, window_bounds = array<i64: 80, 128>}, {pipeline_mode = #tpu.pipeline_mode<synchronous>, transform_indices = @transform_4, window_bounds = array<i64: 20, 128>}, {pipeline_mode = #tpu.pipeline_mode<synchronous>, transform_indices = @transform_5, window_bounds = array<i64: 128, 128>}, {pipeline_mode = #tpu.pipeline_mode<synchronous>, transform_indices = @transform_6, window_bounds = array<i64: 128, 256>}, {pipeline_mode = #tpu.pipeline_mode<synchronous>, transform_indices = @transform_7, window_bounds = array<i64: 80, 128>}, {pipeline_mode = #tpu.pipeline_mode<synchronous>, transform_indices = @transform_8, window_bounds = array<i64: 128, 128>}, {pipeline_mode = #tpu.pipeline_mode<synchronous>, transform_indices = @transform_9, window_bounds = array<i64: 128, 128>}, {pipeline_mode = #tpu.pipeline_mode<synchronous>, transform_indices = @transform_10, window_bounds = array<i64: 128, 128>}, {pipeline_mode = #tpu.pipeline_mode<synchronous>, transform_indices = @transform_11, window_bounds = array<i64: 8, 256>}, {transform_indices = @transform_12, window_bounds = array<i64: 16, 128>}, {transform_indices = @transform_13, window_bounds = array<i64: 16, 128>}, {transform_indices = @transform_14, window_bounds = array<i64: 16, 128>}]} {
    %c0 = arith.constant 0 : index
    %c0_0 = arith.constant 0 : index
    %0 = vector.load %arg1[%c0, %c0_0] : memref<16x80xbf16, #tpu.memory_space<vmem>>, vector<16x80xbf16>
    %c0_1 = arith.constant 0 : index
    %c0_2 = arith.constant 0 : index
    %1 = vector.load %arg2[%c0_1, %c0_2] : memref<16x20xbf16, #tpu.memory_space<vmem>>, vector<16x20xbf16>
    %c0_3 = arith.constant 0 : index
    %c0_4 = arith.constant 0 : index
    %2 = vector.load %arg12[%c0_3, %c0_4] : memref<8x256xf32, #tpu.memory_space<vmem>>, vector<1x128xf32>
    %c1 = arith.constant 1 : index
    %c0_5 = arith.constant 0 : index
    %3 = vector.load %arg12[%c1, %c0_5] : memref<8x256xf32, #tpu.memory_space<vmem>>, vector<1x128xf32>
    %c2 = arith.constant 2 : index
    %c0_6 = arith.constant 0 : index
    %4 = vector.load %arg12[%c2, %c0_6] : memref<8x256xf32, #tpu.memory_space<vmem>>, vector<1x256xf32>
    %c3 = arith.constant 3 : index
    %c0_7 = arith.constant 0 : index
    %5 = vector.load %arg12[%c3, %c0_7] : memref<8x256xf32, #tpu.memory_space<vmem>>, vector<1x128xf32>
    %c4 = arith.constant 4 : index
    %c0_8 = arith.constant 0 : index
    %6 = vector.load %arg12[%c4, %c0_8] : memref<8x256xf32, #tpu.memory_space<vmem>>, vector<1x128xf32>
    %c5 = arith.constant 5 : index
    %c0_9 = arith.constant 0 : index
    %7 = vector.load %arg12[%c5, %c0_9] : memref<8x256xf32, #tpu.memory_space<vmem>>, vector<1x128xf32>
    %c0_10 = arith.constant 0 : index
    %c0_11 = arith.constant 0 : index
    %8 = vector.load %arg4[%c0_10, %c0_11] : memref<80x128xbf16, #tpu.memory_space<vmem>>, vector<80x128xbf16>
    %cst = arith.constant dense<0.000000e+00> : vector<16x128xf32>
    %9 = tpu.matmul %0, %8, %cst {dimension_numbers = #tpu.dot_dimension_numbers<[1], [0], [0], [1], [0, 0, 1, 1], [], []>} : vector<16x80xbf16>, vector<80x128xbf16>, vector<16x128xf32> -> vector<16x128xf32>
    %c0_12 = arith.constant 0 : index
    %c0_13 = arith.constant 0 : index
    %10 = vector.load %arg5[%c0_12, %c0_13] : memref<20x128xbf16, #tpu.memory_space<vmem>>, vector<20x128xbf16>
    %cst_14 = arith.constant dense<0.000000e+00> : vector<16x128xf32>
    %11 = tpu.matmul %1, %10, %cst_14 {dimension_numbers = #tpu.dot_dimension_numbers<[1], [0], [0], [1], [0, 0, 1, 1], [], []>} : vector<16x20xbf16>, vector<20x128xbf16>, vector<16x128xf32> -> vector<16x128xf32>
    %12 = arith.addf %9, %11 : vector<16x128xf32>
    %13 = vector.broadcast %2 : vector<1x128xf32> to vector<16x128xf32>
    %14 = arith.addf %12, %13 : vector<16x128xf32>
    %cst_15 = arith.constant 0.000000e+00 : f32
    %15 = vector.broadcast %cst_15 : f32 to vector<16x128xf32>
    %16 = arith.maximumf %14, %15 : vector<16x128xf32>
    %17 = arith.truncf %16 : vector<16x128xf32> to vector<16x128xbf16>
    %c0_16 = arith.constant 0 : index
    %c0_17 = arith.constant 0 : index
    %18 = vector.load %arg6[%c0_16, %c0_17] : memref<128x128xbf16, #tpu.memory_space<vmem>>, vector<128x128xbf16>
    %cst_18 = arith.constant dense<0.000000e+00> : vector<16x128xf32>
    %19 = tpu.matmul %17, %18, %cst_18 {dimension_numbers = #tpu.dot_dimension_numbers<[1], [0], [0], [1], [0, 0, 1, 1], [], []>} : vector<16x128xbf16>, vector<128x128xbf16>, vector<16x128xf32> -> vector<16x128xf32>
    %20 = vector.broadcast %3 : vector<1x128xf32> to vector<16x128xf32>
    %21 = arith.addf %19, %20 : vector<16x128xf32>
    %cst_19 = arith.constant 0.000000e+00 : f32
    %22 = vector.broadcast %cst_19 : f32 to vector<16x128xf32>
    %23 = arith.maximumf %21, %22 : vector<16x128xf32>
    %24 = arith.truncf %23 : vector<16x128xf32> to vector<16x128xbf16>
    %c0_20 = arith.constant 0 : index
    %c0_21 = arith.constant 0 : index
    %25 = vector.load %arg7[%c0_20, %c0_21] : memref<128x256xbf16, #tpu.memory_space<vmem>>, vector<128x256xbf16>
    %cst_22 = arith.constant dense<0.000000e+00> : vector<16x256xf32>
    %26 = tpu.matmul %24, %25, %cst_22 {dimension_numbers = #tpu.dot_dimension_numbers<[1], [0], [0], [1], [0, 0, 1, 1], [], []>} : vector<16x128xbf16>, vector<128x256xbf16>, vector<16x256xf32> -> vector<16x256xf32>
    %27 = vector.broadcast %4 : vector<1x256xf32> to vector<16x256xf32>
    %28 = arith.addf %26, %27 : vector<16x256xf32>
    %29 = vector.extract_strided_slice %28 {offsets = [0, 0], sizes = [16, 128], strides = [1, 1]} : vector<16x256xf32> to vector<16x128xf32>
    %30 = vector.extract_strided_slice %28 {offsets = [0, 128], sizes = [16, 128], strides = [1, 1]} : vector<16x256xf32> to vector<16x128xf32>
    %cst_23 = arith.constant -4.000000e+00 : f32
    %cst_24 = arith.constant 1.500000e+01 : f32
    %31 = vector.broadcast %cst_23 : f32 to vector<16x128xf32>
    %32 = arith.maximumf %31, %30 : vector<16x128xf32>
    %33 = vector.broadcast %cst_24 : f32 to vector<16x128xf32>
    %34 = arith.minimumf %33, %32 : vector<16x128xf32>
    %35 = math.exp %34 : vector<16x128xf32>
    %c0_25 = arith.constant 0 : index
    %c0_26 = arith.constant 0 : index
    %36 = vector.load %arg3[%c0_25, %c0_26] : memref<16x128xf32, #tpu.memory_space<vmem>>, vector<16x128xf32>
    %37 = arith.mulf %35, %36 : vector<16x128xf32>
    %38 = arith.addf %29, %37 : vector<16x128xf32>
    %c0_27 = arith.constant 0 : index
    %c0_28 = arith.constant 0 : index
    %39 = vector.load %arg8[%c0_27, %c0_28] : memref<80x128xbf16, #tpu.memory_space<vmem>>, vector<80x128xbf16>
    %cst_29 = arith.constant dense<0.000000e+00> : vector<16x128xf32>
    %40 = tpu.matmul %0, %39, %cst_29 {dimension_numbers = #tpu.dot_dimension_numbers<[1], [0], [0], [1], [0, 0, 1, 1], [], []>} : vector<16x80xbf16>, vector<80x128xbf16>, vector<16x128xf32> -> vector<16x128xf32>
    %41 = arith.truncf %38 : vector<16x128xf32> to vector<16x128xbf16>
    %c0_30 = arith.constant 0 : index
    %c0_31 = arith.constant 0 : index
    %42 = vector.load %arg9[%c0_30, %c0_31] : memref<128x128xbf16, #tpu.memory_space<vmem>>, vector<128x128xbf16>
    %cst_32 = arith.constant dense<0.000000e+00> : vector<16x128xf32>
    %43 = tpu.matmul %41, %42, %cst_32 {dimension_numbers = #tpu.dot_dimension_numbers<[1], [0], [0], [1], [0, 0, 1, 1], [], []>} : vector<16x128xbf16>, vector<128x128xbf16>, vector<16x128xf32> -> vector<16x128xf32>
    %44 = arith.addf %40, %43 : vector<16x128xf32>
    %45 = vector.broadcast %5 : vector<1x128xf32> to vector<16x128xf32>
    %46 = arith.addf %44, %45 : vector<16x128xf32>
    %cst_33 = arith.constant 0.000000e+00 : f32
    %47 = vector.broadcast %cst_33 : f32 to vector<16x128xf32>
    %48 = arith.maximumf %46, %47 : vector<16x128xf32>
    %49 = arith.truncf %48 : vector<16x128xf32> to vector<16x128xbf16>
    %c0_34 = arith.constant 0 : index
    %c0_35 = arith.constant 0 : index
    %50 = vector.load %arg10[%c0_34, %c0_35] : memref<128x128xbf16, #tpu.memory_space<vmem>>, vector<128x128xbf16>
    %cst_36 = arith.constant dense<0.000000e+00> : vector<16x128xf32>
    %51 = tpu.matmul %49, %50, %cst_36 {dimension_numbers = #tpu.dot_dimension_numbers<[1], [0], [0], [1], [0, 0, 1, 1], [], []>} : vector<16x128xbf16>, vector<128x128xbf16>, vector<16x128xf32> -> vector<16x128xf32>
    %52 = vector.broadcast %6 : vector<1x128xf32> to vector<16x128xf32>
    %53 = arith.addf %51, %52 : vector<16x128xf32>
    %cst_37 = arith.constant 0.000000e+00 : f32
    %54 = vector.broadcast %cst_37 : f32 to vector<16x128xf32>
    %55 = arith.maximumf %53, %54 : vector<16x128xf32>
    %56 = arith.truncf %55 : vector<16x128xf32> to vector<16x128xbf16>
    %c0_38 = arith.constant 0 : index
    %c0_39 = arith.constant 0 : index
    %57 = vector.load %arg11[%c0_38, %c0_39] : memref<128x128xbf16, #tpu.memory_space<vmem>>, vector<128x128xbf16>
    %cst_40 = arith.constant dense<0.000000e+00> : vector<16x128xf32>
    %58 = tpu.matmul %56, %57, %cst_40 {dimension_numbers = #tpu.dot_dimension_numbers<[1], [0], [0], [1], [0, 0, 1, 1], [], []>} : vector<16x128xbf16>, vector<128x128xbf16>, vector<16x128xf32> -> vector<16x128xf32>
    %59 = vector.broadcast %7 : vector<1x128xf32> to vector<16x128xf32>
    %60 = arith.addf %58, %59 : vector<16x128xf32>
    %c0_41 = arith.constant 0 : index
    %c0_42 = arith.constant 0 : index
    %61 = vector.load %arg13[%c0_41, %c0_42] : memref<16x128xf32, #tpu.memory_space<vmem>>, vector<16x128xf32>
    tpu.vector_store %arg13[%c0_41, %c0_42], %60 {strides = array<i32>} : memref<16x128xf32, #tpu.memory_space<vmem>>, vector<16x128xf32>,
    %c0_43 = arith.constant 0 : index
    %c0_44 = arith.constant 0 : index
    %62 = vector.load %arg14[%c0_43, %c0_44] : memref<16x128xf32, #tpu.memory_space<vmem>>, vector<16x128xf32>
    tpu.vector_store %arg14[%c0_43, %c0_44], %29 {strides = array<i32>} : memref<16x128xf32, #tpu.memory_space<vmem>>, vector<16x128xf32>,
    %c0_45 = arith.constant 0 : index
    %c0_46 = arith.constant 0 : index
    %63 = vector.load %arg15[%c0_45, %c0_46] : memref<16x128xf32, #tpu.memory_space<vmem>>, vector<16x128xf32>
    tpu.vector_store %arg15[%c0_45, %c0_46], %35 {strides = array<i32>} : memref<16x128xf32, #tpu.memory_space<vmem>>, vector<16x128xf32>,
    return
  }
  func.func @transform_0(%arg0: i32) -> (i32, i32) {
    %c0_i32 = arith.constant 0 : i32
    %c0_i32_0 = arith.constant 0 : i32
    return %arg0, %c0_i32 : i32, i32
  }
  func.func @transform_1(%arg0: i32) -> (i32, i32) {
    %c0_i32 = arith.constant 0 : i32
    %c0_i32_0 = arith.constant 0 : i32
    return %arg0, %c0_i32 : i32, i32
  }
  func.func @transform_2(%arg0: i32) -> (i32, i32) {
    %c0_i32 = arith.constant 0 : i32
    %c0_i32_0 = arith.constant 0 : i32
    return %arg0, %c0_i32 : i32, i32
  }
  func.func @transform_3(%arg0: i32) -> (i32, i32) {
    %c0_i32 = arith.constant 0 : i32
    %c0_i32_0 = arith.constant 0 : i32
    %c0_i32_1 = arith.constant 0 : i32
    return %c0_i32, %c0_i32_0 : i32, i32
  }
  func.func @transform_4(%arg0: i32) -> (i32, i32) {
    %c0_i32 = arith.constant 0 : i32
    %c0_i32_0 = arith.constant 0 : i32
    %c0_i32_1 = arith.constant 0 : i32
    return %c0_i32, %c0_i32_0 : i32, i32
  }
  func.func @transform_5(%arg0: i32) -> (i32, i32) {
    %c0_i32 = arith.constant 0 : i32
    %c0_i32_0 = arith.constant 0 : i32
    %c0_i32_1 = arith.constant 0 : i32
    return %c0_i32, %c0_i32_0 : i32, i32
  }
  func.func @transform_6(%arg0: i32) -> (i32, i32) {
    %c0_i32 = arith.constant 0 : i32
    %c0_i32_0 = arith.constant 0 : i32
    %c0_i32_1 = arith.constant 0 : i32
    return %c0_i32, %c0_i32_0 : i32, i32
  }
  func.func @transform_7(%arg0: i32) -> (i32, i32) {
    %c0_i32 = arith.constant 0 : i32
    %c0_i32_0 = arith.constant 0 : i32
    %c0_i32_1 = arith.constant 0 : i32
    return %c0_i32, %c0_i32_0 : i32, i32
  }
  func.func @transform_8(%arg0: i32) -> (i32, i32) {
    %c0_i32 = arith.constant 0 : i32
    %c0_i32_0 = arith.constant 0 : i32
    %c0_i32_1 = arith.constant 0 : i32
    return %c0_i32, %c0_i32_0 : i32, i32
  }
  func.func @transform_9(%arg0: i32) -> (i32, i32) {
    %c0_i32 = arith.constant 0 : i32
    %c0_i32_0 = arith.constant 0 : i32
    %c0_i32_1 = arith.constant 0 : i32
    return %c0_i32, %c0_i32_0 : i32, i32
  }
  func.func @transform_10(%arg0: i32) -> (i32, i32) {
    %c0_i32 = arith.constant 0 : i32
    %c0_i32_0 = arith.constant 0 : i32
    %c0_i32_1 = arith.constant 0 : i32
    return %c0_i32, %c0_i32_0 : i32, i32
  }
  func.func @transform_11(%arg0: i32) -> (i32, i32) {
    %c0_i32 = arith.constant 0 : i32
    %c0_i32_0 = arith.constant 0 : i32
    %c0_i32_1 = arith.constant 0 : i32
    return %c0_i32, %c0_i32_0 : i32, i32
  }
  func.func @transform_12(%arg0: i32) -> (i32, i32) {
    %c0_i32 = arith.constant 0 : i32
    %c0_i32_0 = arith.constant 0 : i32
    return %arg0, %c0_i32 : i32, i32
  }
  func.func @transform_13(%arg0: i32) -> (i32, i32) {
    %c0_i32 = arith.constant 0 : i32
    %c0_i32_0 = arith.constant 0 : i32
    return %arg0, %c0_i32 : i32, i32
  }
  func.func @transform_14(%arg0: i32) -> (i32, i32) {
    %c0_i32 = arith.constant 0 : i32
    %c0_i32_0 = arith.constant 0 : i32
    return %arg0, %c0_i32 : i32, i32
  }
}

module attributes {stable_mosaic.version = 11 : i64} {
  func.func @_vae_kernel(%arg0: i32, %arg1: memref<16x80xbf16, #tpu.memory_space<vmem>>, %arg2: memref<16x20xbf16, #tpu.memory_space<vmem>>, %arg3: memref<16x128xf32, #tpu.memory_space<vmem>>, %arg4: memref<80x128xbf16, #tpu.memory_space<vmem>>, %arg5: memref<20x128xbf16, #tpu.memory_space<vmem>>, %arg6: memref<128x128xbf16, #tpu.memory_space<vmem>>, %arg7: memref<128x256xbf16, #tpu.memory_space<vmem>>, %arg8: memref<80x128xbf16, #tpu.memory_space<vmem>>, %arg9: memref<128x128xbf16, #tpu.memory_space<vmem>>, %arg10: memref<128x128xbf16, #tpu.memory_space<vmem>>, %arg11: memref<128x128xbf16, #tpu.memory_space<vmem>>, %arg12: memref<8x256xf32, #tpu.memory_space<vmem>>, %arg13: memref<16x128xf32, #tpu.memory_space<vmem>>, %arg14: memref<16x128xf32, #tpu.memory_space<vmem>>, %arg15: memref<16x128xf32, #tpu.memory_space<vmem>>) attributes {dimension_semantics = [#tpu.dimension_semantics<parallel>], iteration_bounds = array<i64: 1>, scalar_prefetch = 0 : i64, scratch_operands = 0 : i64, tpu.core_type = #tpu.core_type<tc>, window_params = [{transform_indices = @transform_0, window_bounds = array<i64: 16, 80>}, {transform_indices = @transform_1, window_bounds = array<i64: 16, 20>}, {transform_indices = @transform_2, window_bounds = array<i64: 16, 128>}, {pipeline_mode = #tpu.pipeline_mode<synchronous>, transform_indices = @transform_3, window_bounds = array<i64: 80, 128>}, {pipeline_mode = #tpu.pipeline_mode<synchronous>, transform_indices = @transform_4, window_bounds = array<i64: 20, 128>}, {pipeline_mode = #tpu.pipeline_mode<synchronous>, transform_indices = @transform_5, window_bounds = array<i64: 128, 128>}, {pipeline_mode = #tpu.pipeline_mode<synchronous>, transform_indices = @transform_6, window_bounds = array<i64: 128, 256>}, {pipeline_mode = #tpu.pipeline_mode<synchronous>, transform_indices = @transform_7, window_bounds = array<i64: 80, 128>}, {pipeline_mode = #tpu.pipeline_mode<synchronous>, transform_indices = @transform_8, window_bounds = array<i64: 128, 128>}, {pipeline_mode = #tpu.pipeline_mode<synchronous>, transform_indices = @transform_9, window_bounds = array<i64: 128, 128>}, {pipeline_mode = #tpu.pipeline_mode<synchronous>, transform_indices = @transform_10, window_bounds = array<i64: 128, 128>}, {pipeline_mode = #tpu.pipeline_mode<synchronous>, transform_indices = @transform_11, window_bounds = array<i64: 8, 256>}, {transform_indices = @transform_12, window_bounds = array<i64: 16, 128>}, {transform_indices = @transform_13, window_bounds = array<i64: 16, 128>}, {transform_indices = @transform_14, window_bounds = array<i64: 16, 128>}]} {
    %c0 = arith.constant 0 : index
    %c0_0 = arith.constant 0 : index
    %0 = vector.load %arg1[%c0, %c0_0] : memref<16x80xbf16, #tpu.memory_space<vmem>>, vector<16x80xbf16>
    %c0_1 = arith.constant 0 : index
    %c0_2 = arith.constant 0 : index
    %1 = vector.load %arg2[%c0_1, %c0_2] : memref<16x20xbf16, #tpu.memory_space<vmem>>, vector<16x20xbf16>
    %c0_3 = arith.constant 0 : index
    %c0_4 = arith.constant 0 : index
    %2 = vector.load %arg12[%c0_3, %c0_4] : memref<8x256xf32, #tpu.memory_space<vmem>>, vector<1x128xf32>
    %c1 = arith.constant 1 : index
    %c0_5 = arith.constant 0 : index
    %3 = vector.load %arg12[%c1, %c0_5] : memref<8x256xf32, #tpu.memory_space<vmem>>, vector<1x128xf32>
    %c2 = arith.constant 2 : index
    %c0_6 = arith.constant 0 : index
    %4 = vector.load %arg12[%c2, %c0_6] : memref<8x256xf32, #tpu.memory_space<vmem>>, vector<1x256xf32>
    %c3 = arith.constant 3 : index
    %c0_7 = arith.constant 0 : index
    %5 = vector.load %arg12[%c3, %c0_7] : memref<8x256xf32, #tpu.memory_space<vmem>>, vector<1x128xf32>
    %c4 = arith.constant 4 : index
    %c0_8 = arith.constant 0 : index
    %6 = vector.load %arg12[%c4, %c0_8] : memref<8x256xf32, #tpu.memory_space<vmem>>, vector<1x128xf32>
    %c5 = arith.constant 5 : index
    %c0_9 = arith.constant 0 : index
    %7 = vector.load %arg12[%c5, %c0_9] : memref<8x256xf32, #tpu.memory_space<vmem>>, vector<1x128xf32>
    %c0_10 = arith.constant 0 : index
    %c0_11 = arith.constant 0 : index
    %8 = vector.load %arg4[%c0_10, %c0_11] : memref<80x128xbf16, #tpu.memory_space<vmem>>, vector<80x128xbf16>
    %cst = arith.constant dense<0.000000e+00> : vector<16x128xf32>
    %9 = tpu.matmul %0, %8, %cst {dimension_numbers = #tpu.dot_dimension_numbers<[1], [0], [0], [1], [0, 0, 1, 1], [], []>} : vector<16x80xbf16>, vector<80x128xbf16>, vector<16x128xf32> -> vector<16x128xf32>
    %c0_12 = arith.constant 0 : index
    %c0_13 = arith.constant 0 : index
    %10 = vector.load %arg5[%c0_12, %c0_13] : memref<20x128xbf16, #tpu.memory_space<vmem>>, vector<20x128xbf16>
    %cst_14 = arith.constant dense<0.000000e+00> : vector<16x128xf32>
    %11 = tpu.matmul %1, %10, %cst_14 {dimension_numbers = #tpu.dot_dimension_numbers<[1], [0], [0], [1], [0, 0, 1, 1], [], []>} : vector<16x20xbf16>, vector<20x128xbf16>, vector<16x128xf32> -> vector<16x128xf32>
    %12 = arith.addf %9, %11 : vector<16x128xf32>
    %13 = vector.broadcast %2 : vector<1x128xf32> to vector<16x128xf32>
    %14 = arith.addf %12, %13 : vector<16x128xf32>
    %cst_15 = arith.constant 0.000000e+00 : f32
    %15 = vector.broadcast %cst_15 : f32 to vector<16x128xf32>
    %16 = arith.maximumf %14, %15 : vector<16x128xf32>
    %17 = arith.truncf %16 : vector<16x128xf32> to vector<16x128xbf16>
    %c0_16 = arith.constant 0 : index
    %c0_17 = arith.constant 0 : index
    %18 = vector.load %arg6[%c0_16, %c0_17] : memref<128x128xbf16, #tpu.memory_space<vmem>>, vector<128x128xbf16>
    %cst_18 = arith.constant dense<0.000000e+00> : vector<16x128xf32>
    %19 = tpu.matmul %17, %18, %cst_18 {dimension_numbers = #tpu.dot_dimension_numbers<[1], [0], [0], [1], [0, 0, 1, 1], [], []>} : vector<16x128xbf16>, vector<128x128xbf16>, vector<16x128xf32> -> vector<16x128xf32>
    %20 = vector.broadcast %3 : vector<1x128xf32> to vector<16x128xf32>
    %21 = arith.addf %19, %20 : vector<16x128xf32>
    %cst_19 = arith.constant 0.000000e+00 : f32
    %22 = vector.broadcast %cst_19 : f32 to vector<16x128xf32>
    %23 = arith.maximumf %21, %22 : vector<16x128xf32>
    %24 = arith.truncf %23 : vector<16x128xf32> to vector<16x128xbf16>
    %c0_20 = arith.constant 0 : index
    %c0_21 = arith.constant 0 : index
    %25 = vector.load %arg7[%c0_20, %c0_21] : memref<128x256xbf16, #tpu.memory_space<vmem>>, vector<128x256xbf16>
    %cst_22 = arith.constant dense<0.000000e+00> : vector<16x256xf32>
    %26 = tpu.matmul %24, %25, %cst_22 {dimension_numbers = #tpu.dot_dimension_numbers<[1], [0], [0], [1], [0, 0, 1, 1], [], []>} : vector<16x128xbf16>, vector<128x256xbf16>, vector<16x256xf32> -> vector<16x256xf32>
    %27 = vector.broadcast %4 : vector<1x256xf32> to vector<16x256xf32>
    %28 = arith.addf %26, %27 : vector<16x256xf32>
    %29 = vector.extract_strided_slice %28 {offsets = [0, 0], sizes = [16, 128], strides = [1, 1]} : vector<16x256xf32> to vector<16x128xf32>
    %30 = vector.extract_strided_slice %28 {offsets = [0, 128], sizes = [16, 128], strides = [1, 1]} : vector<16x256xf32> to vector<16x128xf32>
    %cst_23 = arith.constant -4.000000e+00 : f32
    %cst_24 = arith.constant 1.500000e+01 : f32
    %31 = vector.broadcast %cst_23 : f32 to vector<16x128xf32>
    %32 = arith.maximumf %31, %30 : vector<16x128xf32>
    %33 = vector.broadcast %cst_24 : f32 to vector<16x128xf32>
    %34 = arith.minimumf %33, %32 : vector<16x128xf32>
    %35 = math.exp %34 : vector<16x128xf32>
    %c0_25 = arith.constant 0 : index
    %c0_26 = arith.constant 0 : index
    %36 = vector.load %arg3[%c0_25, %c0_26] : memref<16x128xf32, #tpu.memory_space<vmem>>, vector<16x128xf32>
    %37 = arith.mulf %35, %36 : vector<16x128xf32>
    %38 = arith.addf %29, %37 : vector<16x128xf32>
    %c0_27 = arith.constant 0 : index
    %c0_28 = arith.constant 0 : index
    %39 = vector.load %arg8[%c0_27, %c0_28] : memref<80x128xbf16, #tpu.memory_space<vmem>>, vector<80x128xbf16>
    %cst_29 = arith.constant dense<0.000000e+00> : vector<16x128xf32>
    %40 = tpu.matmul %0, %39, %cst_29 {dimension_numbers = #tpu.dot_dimension_numbers<[1], [0], [0], [1], [0, 0, 1, 1], [], []>} : vector<16x80xbf16>, vector<80x128xbf16>, vector<16x128xf32> -> vector<16x128xf32>
    %41 = arith.truncf %38 : vector<16x128xf32> to vector<16x128xbf16>
    %c0_30 = arith.constant 0 : index
    %c0_31 = arith.constant 0 : index
    %42 = vector.load %arg9[%c0_30, %c0_31] : memref<128x128xbf16, #tpu.memory_space<vmem>>, vector<128x128xbf16>
    %cst_32 = arith.constant dense<0.000000e+00> : vector<16x128xf32>
    %43 = tpu.matmul %41, %42, %cst_32 {dimension_numbers = #tpu.dot_dimension_numbers<[1], [0], [0], [1], [0, 0, 1, 1], [], []>} : vector<16x128xbf16>, vector<128x128xbf16>, vector<16x128xf32> -> vector<16x128xf32>
    %44 = arith.addf %40, %43 : vector<16x128xf32>
    %45 = vector.broadcast %5 : vector<1x128xf32> to vector<16x128xf32>
    %46 = arith.addf %44, %45 : vector<16x128xf32>
    %cst_33 = arith.constant 0.000000e+00 : f32
    %47 = vector.broadcast %cst_33 : f32 to vector<16x128xf32>
    %48 = arith.maximumf %46, %47 : vector<16x128xf32>
    %49 = arith.truncf %48 : vector<16x128xf32> to vector<16x128xbf16>
    %c0_34 = arith.constant 0 : index
    %c0_35 = arith.constant 0 : index
    %50 = vector.load %arg10[%c0_34, %c0_35] : memref<128x128xbf16, #tpu.memory_space<vmem>>, vector<128x128xbf16>
    %cst_36 = arith.constant dense<0.000000e+00> : vector<16x128xf32>
    %51 = tpu.matmul %49, %50, %cst_36 {dimension_numbers = #tpu.dot_dimension_numbers<[1], [0], [0], [1], [0, 0, 1, 1], [], []>} : vector<16x128xbf16>, vector<128x128xbf16>, vector<16x128xf32> -> vector<16x128xf32>
    %52 = vector.broadcast %6 : vector<1x128xf32> to vector<16x128xf32>
    %53 = arith.addf %51, %52 : vector<16x128xf32>
    %cst_37 = arith.constant 0.000000e+00 : f32
    %54 = vector.broadcast %cst_37 : f32 to vector<16x128xf32>
    %55 = arith.maximumf %53, %54 : vector<16x128xf32>
    %56 = arith.truncf %55 : vector<16x128xf32> to vector<16x128xbf16>
    %c0_38 = arith.constant 0 : index
    %c0_39 = arith.constant 0 : index
    %57 = vector.load %arg11[%c0_38, %c0_39] : memref<128x128xbf16, #tpu.memory_space<vmem>>, vector<128x128xbf16>
    %cst_40 = arith.constant dense<0.000000e+00> : vector<16x128xf32>
    %58 = tpu.matmul %56, %57, %cst_40 {dimension_numbers = #tpu.dot_dimension_numbers<[1], [0], [0], [1], [0, 0, 1, 1], [], []>} : vector<16x128xbf16>, vector<128x128xbf16>, vector<16x128xf32> -> vector<16x128xf32>
    %59 = vector.broadcast %7 : vector<1x128xf32> to vector<16x128xf32>
    %60 = arith.addf %58, %59 : vector<16x128xf32>
    %c0_41 = arith.constant 0 : index
    %c0_42 = arith.constant 0 : index
    %61 = vector.load %arg13[%c0_41, %c0_42] : memref<16x128xf32, #tpu.memory_space<vmem>>, vector<16x128xf32>
    tpu.vector_store %arg13[%c0_41, %c0_42], %60 {strides = array<i32>} : memref<16x128xf32, #tpu.memory_space<vmem>>, vector<16x128xf32>,
    %c0_43 = arith.constant 0 : index
    %c0_44 = arith.constant 0 : index
    %62 = vector.load %arg14[%c0_43, %c0_44] : memref<16x128xf32, #tpu.memory_space<vmem>>, vector<16x128xf32>
    tpu.vector_store %arg14[%c0_43, %c0_44], %29 {strides = array<i32>} : memref<16x128xf32, #tpu.memory_space<vmem>>, vector<16x128xf32>,
    %c0_45 = arith.constant 0 : index
    %c0_46 = arith.constant 0 : index
    %63 = vector.load %arg15[%c0_45, %c0_46] : memref<16x128xf32, #tpu.memory_space<vmem>>, vector<16x128xf32>
    tpu.vector_store %arg15[%c0_45, %c0_46], %35 {strides = array<i32>} : memref<16x128xf32, #tpu.memory_space<vmem>>, vector<16x128xf32>,
    return
  }
  func.func @transform_0(%arg0: i32) -> (i32, i32) {
    %c0_i32 = arith.constant 0 : i32
    %c0_i32_0 = arith.constant 0 : i32
    return %arg0, %c0_i32 : i32, i32
  }
  func.func @transform_1(%arg0: i32) -> (i32, i32) {
    %c0_i32 = arith.constant 0 : i32
    %c0_i32_0 = arith.constant 0 : i32
    return %arg0, %c0_i32 : i32, i32
  }
  func.func @transform_2(%arg0: i32) -> (i32, i32) {
    %c0_i32 = arith.constant 0 : i32
    %c0_i32_0 = arith.constant 0 : i32
    return %arg0, %c0_i32 : i32, i32
  }
  func.func @transform_3(%arg0: i32) -> (i32, i32) {
    %c0_i32 = arith.constant 0 : i32
    %c0_i32_0 = arith.constant 0 : i32
    %c0_i32_1 = arith.constant 0 : i32
    return %c0_i32, %c0_i32_0 : i32, i32
  }
  func.func @transform_4(%arg0: i32) -> (i32, i32) {
    %c0_i32 = arith.constant 0 : i32
    %c0_i32_0 = arith.constant 0 : i32
    %c0_i32_1 = arith.constant 0 : i32
    return %c0_i32, %c0_i32_0 : i32, i32
  }
  func.func @transform_5(%arg0: i32) -> (i32, i32) {
    %c0_i32 = arith.constant 0 : i32
    %c0_i32_0 = arith.constant 0 : i32
    %c0_i32_1 = arith.constant 0 : i32
    return %c0_i32, %c0_i32_0 : i32, i32
  }
  func.func @transform_6(%arg0: i32) -> (i32, i32) {
    %c0_i32 = arith.constant 0 : i32
    %c0_i32_0 = arith.constant 0 : i32
    %c0_i32_1 = arith.constant 0 : i32
    return %c0_i32, %c0_i32_0 : i32, i32
  }
  func.func @transform_7(%arg0: i32) -> (i32, i32) {
    %c0_i32 = arith.constant 0 : i32
    %c0_i32_0 = arith.constant 0 : i32
    %c0_i32_1 = arith.constant 0 : i32
    return %c0_i32, %c0_i32_0 : i32, i32
  }
  func.func @transform_8(%arg0: i32) -> (i32, i32) {
    %c0_i32 = arith.constant 0 : i32
    %c0_i32_0 = arith.constant 0 : i32
    %c0_i32_1 = arith.constant 0 : i32
    return %c0_i32, %c0_i32_0 : i32, i32
  }
  func.func @transform_9(%arg0: i32) -> (i32, i32) {
    %c0_i32 = arith.constant 0 : i32
    %c0_i32_0 = arith.constant 0 : i32
    %c0_i32_1 = arith.constant 0 : i32
    return %c0_i32, %c0_i32_0 : i32, i32
  }
  func.func @transform_10(%arg0: i32) -> (i32, i32) {
    %c0_i32 = arith.constant 0 : i32
    %c0_i32_0 = arith.constant 0 : i32
    %c0_i32_1 = arith.constant 0 : i32
    return %c0_i32, %c0_i32_0 : i32, i32
  }
  func.func @transform_11(%arg0: i32) -> (i32, i32) {
    %c0_i32 = arith.constant 0 : i32
    %c0_i32_0 = arith.constant 0 : i32
    %c0_i32_1 = arith.constant 0 : i32
    return %c0_i32, %c0_i32_0 : i32, i32
  }
  func.func @transform_12(%arg0: i32) -> (i32, i32) {
    %c0_i32 = arith.constant 0 : i32
    %c0_i32_0 = arith.constant 0 : i32
    return %arg0, %c0_i32 : i32, i32
  }
  func.func @transform_13(%arg0: i32) -> (i32, i32) {
    %c0_i32 = arith.constant 0 : i32
    %c0_i32_0 = arith.constant 0 : i32
    return %arg0, %c0_i32 : i32, i32
  }
  func.func @transform_14(%arg0: i32) -> (i32, i32) {
    %c0_i32 = arith.constant 0 : i32
    %c0_i32_0 = arith.constant 0 : i32
    return %arg0, %c0_i32 : i32, i32
  }
}

</mosaic_0001>

<llo_original>
// kernel: tpu_custom_call.1
$region0: #{tpu_custom_call.1}
  #allocation0 [shape = 'u32[]', space=smem, size = 0x4, offset = 0x4, fixed_abs, tag = 'smem constant byte address 0x4 - core index']
  #allocation1 [shape = 'u32[144,128]{1,0:T(1,128)}', space=vmem, size = 0x12000, scoped, tag = 'internal scratch']
  %s0 = inlined_call_operand.hbm [shape: bf16[16,80], index: 0, kind: input, shape index: {}]
  %s1 = inlined_call_operand.hbm [shape: bf16[16,20], index: 1, kind: input, shape index: {}]
  %s2 = inlined_call_operand.hbm [shape: f32[16,128], index: 2, kind: input, shape index: {}]
  %s3 = inlined_call_operand.hbm [shape: bf16[80,128], index: 3, kind: input, shape index: {}]
  %s4 = inlined_call_operand.hbm [shape: bf16[20,128], index: 4, kind: input, shape index: {}]
  %s5 = inlined_call_operand.hbm [shape: bf16[128,128], index: 5, kind: input, shape index: {}]
  %s6 = inlined_call_operand.hbm [shape: bf16[128,256], index: 6, kind: input, shape index: {}]
  %s7 = inlined_call_operand.hbm [shape: bf16[80,128], index: 7, kind: input, shape index: {}]
  %s8 = inlined_call_operand.hbm [shape: bf16[128,128], index: 8, kind: input, shape index: {}]
  %s9 = inlined_call_operand.hbm [shape: bf16[128,128], index: 9, kind: input, shape index: {}]
  %s10 = inlined_call_operand.hbm [shape: bf16[128,128], index: 10, kind: input, shape index: {}]
  %s11 = inlined_call_operand.vmem [shape: f32[8,256], index: 11, kind: input, shape index: {}]
  %s12 = inlined_call_operand.hbm [shape: f32[16,128], index: 12, kind: output, shape index: {0}]
  %s13 = inlined_call_operand.hbm [shape: f32[16,128], index: 13, kind: output, shape index: {1}]
  %s14 = inlined_call_operand.hbm [shape: f32[16,128], index: 14, kind: output, shape index: {2}]
  %15 = xla_tuple %s12, %s13, %s14
  %s16 = sld [smem:[#allocation0]]
  $region118: #{tpu_custom_call.1} parent=0
    _
  %s18 = ssub.s32 1, %s16
  %s19 = scalar_select 0, %s18, %s16
  $region1: #{tpu_custom_call.1} parent=0
    #allocation2 [shape = 'u8[4096]{0}', space=vmem, size = 0x1000, scoped, tag = 'input window, operand 0, single buffered']
    #allocation3 [shape = 's32[1]{0}', space=sflag, size = 0x4, scoped, tag = 'scoped memory for tpu_custom_call.1']
    #allocation4 [shape = 's32[1]{0}', space=sflag, size = 0x4, scoped, tag = 'scoped memory for tpu_custom_call.1']
    #allocation5 [shape = 'u8[4096]{0}', space=vmem, size = 0x1000, scoped, tag = 'input window, operand 1, single buffered']
    #allocation6 [shape = 's32[1]{0}', space=sflag, size = 0x4, scoped, tag = 'scoped memory for tpu_custom_call.1']
    #allocation7 [shape = 'u8[8192]{0}', space=vmem, size = 0x2000, scoped, tag = 'input window, operand 2, single buffered']
    #allocation8 [shape = 'u8[20480]{0}', space=vmem, size = 0x5000, scoped, tag = 'input window, operand 3, single buffered']
    #allocation9 [shape = 's32[1]{0}', space=sflag, size = 0x4, scoped, tag = 'scoped memory for tpu_custom_call.1']
    #allocation10 [shape = 'u8[6144]{0}', space=vmem, size = 0x1800, scoped, tag = 'input window, operand 4, single buffered']
    #allocation11 [shape = 'u8[32768]{0}', space=vmem, size = 0x8000, scoped, tag = 'input window, operand 5, single buffered']
    #allocation12 [shape = 's32[1]{0}', space=sflag, size = 0x4, scoped, tag = 'scoped memory for tpu_custom_call.1']
    #allocation13 [shape = 'u8[65536]{0}', space=vmem, size = 0x10000, scoped, tag = 'input window, operand 6, single buffered']
    #allocation14 [shape = 'u8[20480]{0}', space=vmem, size = 0x5000, scoped, tag = 'input window, operand 7, single buffered']
    #allocation15 [shape = 's32[1]{0}', space=sflag, size = 0x4, scoped, tag = 'scoped memory for tpu_custom_call.1']
    #allocation16 [shape = 'u8[32768]{0}', space=vmem, size = 0x8000, scoped, tag = 'input window, operand 8, single buffered']
    #allocation17 [shape = 'u8[32768]{0}', space=vmem, size = 0x8000, scoped, tag = 'input window, operand 9, single buffered']
    #allocation18 [shape = 's32[1]{0}', space=sflag, size = 0x4, scoped, tag = 'scoped memory for tpu_custom_call.1']
    #allocation19 [shape = 'u8[32768]{0}', space=vmem, size = 0x8000, scoped, tag = 'input window, operand 10, single buffered']
    #allocation20 [shape = 'u8[8192]{0}', space=vmem, size = 0x2000, scoped, tag = 'output window, operand 0, single buffered']
    #allocation21 [shape = 'u8[8192]{0}', space=vmem, size = 0x2000, scoped, tag = 'output window, operand 1, single buffered']
    #allocation22 [shape = 's32[1]{0}', space=sflag, size = 0x4, scoped, tag = 'scoped memory for tpu_custom_call.1']
    #allocation23 [shape = 'u8[8192]{0}', space=vmem, size = 0x2000, scoped, tag = 'output window, operand 2, single buffered']
    %20 = vsyncpa [#allocation3], 0
    %21 = vsyncpa [#allocation6], 0
    %22 = vsyncpa [#allocation9], 0
    %23 = vsyncpa [#allocation12], 0
    %24 = vsyncpa [#allocation15], 0
    %25 = vsyncpa [#allocation18], 0
    %26 = vsyncpa [#allocation4], 0
    %27 = vsyncpa [#allocation22], 0
    // Predicated region
    $region2: #{tpu_custom_call.1} parent=1 // pred_check
      _
    $region3: #{tpu_custom_call.1} parent=1 // pred_check_branch
      %29 = sbr.rel (0) target = $region5
    $region4: #{tpu_custom_call.1} parent=1 // pred_region
      %s31 = ssub.s32 128, 128
      %32 = vsyncadd [#allocation3], %s31
      %s33 = sshll.u32 [#allocation2], 4
      %s34 = int_to_ptr.vmem [resolvable:$true] %s33
      %39 = dma.hbm_to_vmem [thread:$0]  %s0, 128, %s34, [#allocation3], 64, 64, 4
    $region5: #{tpu_custom_call.1} parent=1 // pred_fallthru
      _
    // Predicated region
    $region6: #{tpu_custom_call.1} parent=1 // pred_check
      _
    $region7: #{tpu_custom_call.1} parent=1 // pred_check_branch
      %41 = sbr.rel (0) target = $region9
    $region8: #{tpu_custom_call.1} parent=1 // pred_region
      %s43 = ssub.s32 128, 128
      %44 = vsyncadd [#allocation6], %s43
      %s45 = sshll.u32 [#allocation5], 4
      %s46 = int_to_ptr.vmem [resolvable:$true] %s45
      %51 = dma.hbm_to_vmem [thread:$0]  %s1, 128, %s46, [#allocation6], 64, 64, 4
    $region9: #{tpu_custom_call.1} parent=1 // pred_fallthru
      _
    // Predicated region
    $region10: #{tpu_custom_call.1} parent=1 // pred_check
      _
    $region11: #{tpu_custom_call.1} parent=1 // pred_check_branch
      %53 = sbr.rel (0) target = $region13
    $region12: #{tpu_custom_call.1} parent=1 // pred_region
      %s55 = ssub.s32 256, 256
      %56 = vsyncadd [#allocation6], %s55
      %s57 = sshll.u32 [#allocation7], 4
      %s58 = int_to_ptr.vmem [resolvable:$true] %s57
      %63 = dma.hbm_to_vmem [thread:$0]  %s2, 256, %s58, [#allocation6], 128, 128, 8
    $region13: #{tpu_custom_call.1} parent=1 // pred_fallthru
      _
    // Predicated region
    $region14: #{tpu_custom_call.1} parent=1 // pred_check
      _
    $region15: #{tpu_custom_call.1} parent=1 // pred_check_branch
      %65 = sbr.rel (0) target = $region17
    $region16: #{tpu_custom_call.1} parent=1 // pred_region
      %s67 = ssub.s32 640, 640
      %68 = vsyncadd [#allocation9], %s67
      %s69 = sshll.u32 [#allocation8], 4
      %s70 = int_to_ptr.vmem [resolvable:$true] %s69
      %75 = dma.hbm_to_vmem [thread:$0]  %s3, 640, %s70, [#allocation9], 64, 64, 4
    $region17: #{tpu_custom_call.1} parent=1 // pred_fallthru
      _
    // Predicated region
    $region18: #{tpu_custom_call.1} parent=1 // pred_check
      _
    $region19: #{tpu_custom_call.1} parent=1 // pred_check_branch
      %77 = sbr.rel (0) target = $region21
    $region20: #{tpu_custom_call.1} parent=1 // pred_region
      %s79 = ssub.s32 192, 192
      %80 = vsyncadd [#allocation9], %s79
      %s81 = sshll.u32 [#allocation10], 4
      %s82 = int_to_ptr.vmem [resolvable:$true] %s81
      %87 = dma.hbm_to_vmem [thread:$0]  %s4, 192, %s82, [#allocation9], 64, 64, 4
    $region21: #{tpu_custom_call.1} parent=1 // pred_fallthru
      _
    // Predicated region
    $region22: #{tpu_custom_call.1} parent=1 // pred_check
      _
    $region23: #{tpu_custom_call.1} parent=1 // pred_check_branch
      %89 = sbr.rel (0) target = $region25
    $region24: #{tpu_custom_call.1} parent=1 // pred_region
      %s91 = ssub.s32 1024, 1024
      %92 = vsyncadd [#allocation12], %s91
      %s93 = sshll.u32 [#allocation11], 4
      %s94 = int_to_ptr.vmem [resolvable:$true] %s93
      %99 = dma.hbm_to_vmem [thread:$0]  %s5, 1024, %s94, [#allocation12], 64, 64, 4
    $region25: #{tpu_custom_call.1} parent=1 // pred_fallthru
      _
    // Predicated region
    $region26: #{tpu_custom_call.1} parent=1 // pred_check
      _
    $region27: #{tpu_custom_call.1} parent=1 // pred_check_branch
      %101 = sbr.rel (0) target = $region29
    $region28: #{tpu_custom_call.1} parent=1 // pred_region
      %s103 = ssub.s32 2048, 2048
      %104 = vsyncadd [#allocation12], %s103
      %s105 = sshll.u32 [#allocation13], 4
      %s106 = int_to_ptr.vmem [resolvable:$true] %s105
      %111 = dma.hbm_to_vmem [thread:$0]  %s6, 2048, %s106, [#allocation12], 128, 128, 8
    $region29: #{tpu_custom_call.1} parent=1 // pred_fallthru
      _
    // Predicated region
    $region30: #{tpu_custom_call.1} parent=1 // pred_check
      _
    $region31: #{tpu_custom_call.1} parent=1 // pred_check_branch
      %113 = sbr.rel (0) target = $region33
    $region32: #{tpu_custom_call.1} parent=1 // pred_region
      %s115 = ssub.s32 640, 640
      %116 = vsyncadd [#allocation15], %s115
      %s117 = sshll.u32 [#allocation14], 4
      %s118 = int_to_ptr.vmem [resolvable:$true] %s117
      %123 = dma.hbm_to_vmem [thread:$0]  %s7, 640, %s118, [#allocation15], 64, 64, 4
    $region33: #{tpu_custom_call.1} parent=1 // pred_fallthru
      _
    // Predicated region
    $region34: #{tpu_custom_call.1} parent=1 // pred_check
      _
    $region35: #{tpu_custom_call.1} parent=1 // pred_check_branch
      %125 = sbr.rel (0) target = $region37
    $region36: #{tpu_custom_call.1} parent=1 // pred_region
      %s127 = ssub.s32 1024, 1024
      %128 = vsyncadd [#allocation15], %s127
      %s129 = sshll.u32 [#allocation16], 4
      %s130 = int_to_ptr.vmem [resolvable:$true] %s129
      %135 = dma.hbm_to_vmem [thread:$0]  %s8, 1024, %s130, [#allocation15], 64, 64, 4
    $region37: #{tpu_custom_call.1} parent=1 // pred_fallthru
      _
    // Predicated region
    $region38: #{tpu_custom_call.1} parent=1 // pred_check
      _
    $region39: #{tpu_custom_call.1} parent=1 // pred_check_branch
      %137 = sbr.rel (0) target = $region41
    $region40: #{tpu_custom_call.1} parent=1 // pred_region
      %s139 = ssub.s32 1024, 1024
      %140 = vsyncadd [#allocation18], %s139
      %s141 = sshll.u32 [#allocation17], 4
      %s142 = int_to_ptr.vmem [resolvable:$true] %s141
      %147 = dma.hbm_to_vmem [thread:$0]  %s9, 1024, %s142, [#allocation18], 64, 64, 4
    $region41: #{tpu_custom_call.1} parent=1 // pred_fallthru
      _
    // Predicated region
    $region42: #{tpu_custom_call.1} parent=1 // pred_check
      _
    $region43: #{tpu_custom_call.1} parent=1 // pred_check_branch
      %149 = sbr.rel (0) target = $region45
    $region44: #{tpu_custom_call.1} parent=1 // pred_region
      %s151 = ssub.s32 1024, 1024
      %152 = vsyncadd [#allocation18], %s151
      %s153 = sshll.u32 [#allocation19], 4
      %s154 = int_to_ptr.vmem [resolvable:$true] %s153
      %159 = dma.hbm_to_vmem [thread:$0]  %s10, 1024, %s154, [#allocation18], 64, 64, 4
    $region45: #{tpu_custom_call.1} parent=1 // pred_fallthru
      _
    // Predicated region
    $region46: #{tpu_custom_call.1} parent=1 // pred_check
      _
    $region47: #{tpu_custom_call.1} parent=1 // pred_check_branch
      %161 = sbr.rel (0) target = $region49
    $region48: #{tpu_custom_call.1} parent=1 // pred_region
      _
    $region49: #{tpu_custom_call.1} parent=1 // pred_fallthru
      _
    // Predicated region
    $region50: #{tpu_custom_call.1} parent=1 // pred_check
      _
    $region51: #{tpu_custom_call.1} parent=1 // pred_check_branch
      %163 = sbr.rel (0) target = $region53
    $region52: #{tpu_custom_call.1} parent=1 // pred_region
      %164 = dma.done [#allocation3], 128
    $region53: #{tpu_custom_call.1} parent=1 // pred_fallthru
      _
    // Predicated region
    $region54: #{tpu_custom_call.1} parent=1 // pred_check
      _
    $region55: #{tpu_custom_call.1} parent=1 // pred_check_branch
      %166 = sbr.rel (0) target = $region57
    $region56: #{tpu_custom_call.1} parent=1 // pred_region
      %167 = dma.done [#allocation6], 128
    $region57: #{tpu_custom_call.1} parent=1 // pred_fallthru
      _
    // Predicated region
    $region58: #{tpu_custom_call.1} parent=1 // pred_check
      _
    $region59: #{tpu_custom_call.1} parent=1 // pred_check_branch
      %169 = sbr.rel (0) target = $region61
    $region60: #{tpu_custom_call.1} parent=1 // pred_region
      %170 = dma.done [#allocation6], 256
    $region61: #{tpu_custom_call.1} parent=1 // pred_fallthru
      _
    // Predicated region
    $region62: #{tpu_custom_call.1} parent=1 // pred_check
      _
    $region63: #{tpu_custom_call.1} parent=1 // pred_check_branch
      %172 = sbr.rel (0) target = $region65
    $region64: #{tpu_custom_call.1} parent=1 // pred_region
      %173 = dma.done [#allocation9], 640
    $region65: #{tpu_custom_call.1} parent=1 // pred_fallthru
      _
    // Predicated region
    $region66: #{tpu_custom_call.1} parent=1 // pred_check
      _
    $region67: #{tpu_custom_call.1} parent=1 // pred_check_branch
      %175 = sbr.rel (0) target = $region69
    $region68: #{tpu_custom_call.1} parent=1 // pred_region
      %176 = dma.done [#allocation9], 192
    $region69: #{tpu_custom_call.1} parent=1 // pred_fallthru
      _
    // Predicated region
    $region70: #{tpu_custom_call.1} parent=1 // pred_check
      _
    $region71: #{tpu_custom_call.1} parent=1 // pred_check_branch
      %178 = sbr.rel (0) target = $region73
    $region72: #{tpu_custom_call.1} parent=1 // pred_region
      %179 = dma.done [#allocation12], 1024
    $region73: #{tpu_custom_call.1} parent=1 // pred_fallthru
      _
    // Predicated region
    $region74: #{tpu_custom_call.1} parent=1 // pred_check
      _
    $region75: #{tpu_custom_call.1} parent=1 // pred_check_branch
      %181 = sbr.rel (0) target = $region77
    $region76: #{tpu_custom_call.1} parent=1 // pred_region
      %182 = dma.done [#allocation12], 2048
    $region77: #{tpu_custom_call.1} parent=1 // pred_fallthru
      _
    // Predicated region
    $region78: #{tpu_custom_call.1} parent=1 // pred_check
      _
    $region79: #{tpu_custom_call.1} parent=1 // pred_check_branch
      %184 = sbr.rel (0) target = $region81
    $region80: #{tpu_custom_call.1} parent=1 // pred_region
      %185 = dma.done [#allocation15], 640
    $region81: #{tpu_custom_call.1} parent=1 // pred_fallthru
      _
    // Predicated region
    $region82: #{tpu_custom_call.1} parent=1 // pred_check
      _
    $region83: #{tpu_custom_call.1} parent=1 // pred_check_branch
      %187 = sbr.rel (0) target = $region85
    $region84: #{tpu_custom_call.1} parent=1 // pred_region
      %188 = dma.done [#allocation15], 1024
    $region85: #{tpu_custom_call.1} parent=1 // pred_fallthru
      _
    // Predicated region
    $region86: #{tpu_custom_call.1} parent=1 // pred_check
      _
    $region87: #{tpu_custom_call.1} parent=1 // pred_check_branch
      %190 = sbr.rel (0) target = $region89
    $region88: #{tpu_custom_call.1} parent=1 // pred_region
      %191 = dma.done [#allocation18], 1024
    $region89: #{tpu_custom_call.1} parent=1 // pred_fallthru
      _
    // Predicated region
    $region90: #{tpu_custom_call.1} parent=1 // pred_check
      _
    $region91: #{tpu_custom_call.1} parent=1 // pred_check_branch
      %193 = sbr.rel (0) target = $region93
    $region92: #{tpu_custom_call.1} parent=1 // pred_region
      %194 = dma.done [#allocation18], 1024
    $region93: #{tpu_custom_call.1} parent=1 // pred_fallthru
      _
    %v196 = vld [vmem:[#allocation2] sm:$0xf]
    %v197 = vld [vmem:[#allocation2 + $0x4] sm:$0xf]
    %v198 = vld [vmem:[#allocation5] sm:$0xf]
    %v199 = vld [vmem:[#allocation5 + $0x4] sm:$0xf]
    %v200 = vld [vmem:[%s11] ss:$0 sm:$0xff]
    %v201 = vld [vmem:[%s11 + $0x1] ss:$0 sm:$0xff]
    %s202 = scalar_lea.vmem %s11, 2
    %v203 = vld [vmem:[%s202] ss:$8 sm:$0x3]
    %v204 = vld [vmem:[%s11 + $0x3] ss:$0 sm:$0xff]
    %v205 = vld [vmem:[%s11 + $0x4] ss:$0 sm:$0xff]
    %v206 = vld [vmem:[%s11 + $0x5] ss:$0 sm:$0xff]
    %v207 = vld [vmem:[#allocation8] sm:$0xf]
    %v208 = vld [vmem:[#allocation8 + $0x4] sm:$0xf]
    %v209 = vld [vmem:[#allocation8 + $0x8] sm:$0xf]
    %v210 = vld [vmem:[#allocation8 + $0xc] sm:$0xf]
    %v211 = vld [vmem:[#allocation8 + $0x10] sm:$0xf]
    %v212 = vld [vmem:[#allocation8 + $0x14] sm:$0xf]
    %v213 = vld [vmem:[#allocation8 + $0x18] sm:$0xf]
    %v214 = vld [vmem:[#allocation8 + $0x1c] sm:$0xf]
    %v215 = vld [vmem:[#allocation8 + $0x20] sm:$0xf]
    %v216 = vld [vmem:[#allocation8 + $0x24] sm:$0xf]
    %v217 = vld [vmem:[#allocation10] sm:$0xf]
    %v218 = vld [vmem:[#allocation10 + $0x4] sm:$0xf]
    %v219 = vld [vmem:[#allocation10 + $0x8] sm:$0x3]
    %v222 = vunpack.c.l.b16 %v198
    %v223 = vunpack.c.l.b16 %v199
    %v224 = vpack.c.b16 %v223, %v222
    %v228 = vunpack.c.l.b16 %v217
    %v229 = vunpack.c.l.b16 %v218
    %v230 = vunpack.c.l.b16 %v219
    %v231 = vpack.c.b16 %v229, %v228
    %v232 = vpack.c.b16 %v230, %v230
    %vm234 = vcmask 162816
    %v236 = vsel %vm234, %v224, 0
    %vm238 = vcmask 1041408
    %v240 = vsel %vm238, %v232, 0
    %242 = vmatprep.subr.bf16.mxu0 0
    %243 = vmatpush1.bf16.msra.mxu0 0
    %244 = vmatprep.subr.bf16.mxu0 0
    %245 = vmatpush1.bf16.msra.mxu0 0
    %246 = vmatprep.subr.bf16.mxu0 0
    %247 = vmatpush1.bf16.msra.mxu0 0
    %248 = vmatprep.subr.bf16.mxu0 0
    %249 = vmatpush1.bf16.msra.mxu0 0
    %250 = vmatprep.subr.bf16.mxu0 0
    %251 = vmatpush1.bf16.msra.mxu0 0
    %252 = vmatprep.subr.bf16.mxu0 0
    %253 = vmatpush1.bf16.msra.mxu0 0
    %254 = vmatprep.subr.bf16.mxu0 0
    %255 = vmatpush1.bf16.msra.mxu0 %v240
    %256 = vmatprep.subr.bf16.mxu0 0
    %257 = vmatpush1.bf16.msra.mxu0 %v231
    %258 = vmatprep.subr.bf16.mxu0 0
    %259 = vmatpush2.bf16.msra.mxu0 0
    %260 = vmatprep.subr.bf16.mxu0 0
    %261 = vmatpush2.bf16.msra.mxu0 0
    %262 = vmatprep.subr.bf16.mxu0 0
    %263 = vmatpush2.bf16.msra.mxu0 0
    %264 = vmatprep.subr.bf16.mxu0 0
    %265 = vmatpush2.bf16.msra.mxu0 0
    %266 = vmatprep.subr.bf16.mxu0 0
    %267 = vmatpush2.bf16.msra.mxu0 0
    %268 = vmatprep.subr.bf16.mxu0 0
    %269 = vmatpush2.bf16.msra.mxu0 0
    %270 = vmatprep.subr.bf16.mxu0 0
    %271 = vmatpush2.bf16.msra.mxu0 0
    %272 = vmatprep.subr.bf16.mxu0 0
    %273 = vmatpush2.bf16.msra.mxu0 0
    %274 = vmatprep.mubr.bf16.mxu0 0
    %275 = vmatmul.mubr.bf16.gmra.mxu0 %v236
    %v276 = vpop.f32.mrf.mxu0
    %v277 = vadd.f32 0.0, %v276
    %v278 = vpop.f32.mrf.mxu0
    %v279 = vpop.f32.mrf.mxu0
    %v280 = vadd.f32 0.0, %v279
    %v281 = vpop.f32.mrf.mxu0
    %282 = vdwg.mxu0
    %v285 = vunpack.c.l.b16 %v196
    %v286 = vunpack.c.l.b16 %v197
    %v287 = vpack.c.b16 %v286, %v285
    %v298 = vunpack.c.l.b16 %v207
    %v299 = vunpack.c.l.b16 %v208
    %v300 = vunpack.c.l.b16 %v209
    %v301 = vunpack.c.l.b16 %v210
    %v302 = vunpack.c.l.b16 %v211
    %v303 = vunpack.c.l.b16 %v212
    %v304 = vunpack.c.l.b16 %v213
    %v305 = vunpack.c.l.b16 %v214
    %v306 = vunpack.c.l.b16 %v215
    %v307 = vunpack.c.l.b16 %v216
    %v308 = vpack.c.b16 %v299, %v298
    %v309 = vpack.c.b16 %v301, %v300
    %v310 = vpack.c.b16 %v303, %v302
    %v311 = vpack.c.b16 %v305, %v304
    %v312 = vpack.c.b16 %v307, %v306
    %vm318 = vcmask 654336
    %v320 = vsel %vm318, %v287, 0
    %322 = vmatprep.subr.bf16.mxu0 0
    %323 = vmatpush1.bf16.msra.mxu0 0
    %324 = vmatprep.subr.bf16.mxu0 0
    %325 = vmatpush1.bf16.msra.mxu0 0
    %326 = vmatprep.subr.bf16.mxu0 0
    %327 = vmatpush1.bf16.msra.mxu0 0
    %328 = vmatprep.subr.bf16.mxu0 0
    %329 = vmatpush1.bf16.msra.mxu0 %v312
    %330 = vmatprep.subr.bf16.mxu0 0
    %331 = vmatpush1.bf16.msra.mxu0 %v311
    %332 = vmatprep.subr.bf16.mxu0 0
    %333 = vmatpush1.bf16.msra.mxu0 %v310
    %334 = vmatprep.subr.bf16.mxu0 0
    %335 = vmatpush1.bf16.msra.mxu0 %v309
    %336 = vmatprep.subr.bf16.mxu0 0
    %337 = vmatpush1.bf16.msra.mxu0 %v308
    %338 = vmatprep.subr.bf16.mxu0 0
    %339 = vmatpush2.bf16.msra.mxu0 0
    %340 = vmatprep.subr.bf16.mxu0 0
    %341 = vmatpush2.bf16.msra.mxu0 0
    %342 = vmatprep.subr.bf16.mxu0 0
    %343 = vmatpush2.bf16.msra.mxu0 0
    %344 = vmatprep.subr.bf16.mxu0 0
    %345 = vmatpush2.bf16.msra.mxu0 0
    %346 = vmatprep.subr.bf16.mxu0 0
    %347 = vmatpush2.bf16.msra.mxu0 0
    %348 = vmatprep.subr.bf16.mxu0 0
    %349 = vmatpush2.bf16.msra.mxu0 0
    %350 = vmatprep.subr.bf16.mxu0 0
    %351 = vmatpush2.bf16.msra.mxu0 0
    %352 = vmatprep.subr.bf16.mxu0 0
    %353 = vmatpush2.bf16.msra.mxu0 0
    %354 = vmatprep.mubr.bf16.mxu0 0
    %355 = vmatmul.mubr.bf16.gmra.mxu0 %v320
    %v356 = vpop.f32.mrf.mxu0
    %v357 = vadd.f32 %v277, %v356
    %v358 = vpop.f32.mrf.mxu0
    %v359 = vpop.f32.mrf.mxu0
    %v360 = vadd.f32 %v280, %v359
    %v361 = vpop.f32.mrf.mxu0
    %362 = vdwg.mxu0
    %v363 = vadd.f32 %v357, %v200
    %v364 = vadd.f32 %v360, %v200
    %v365 = vmax.f32 %v363, 0.0
    %v366 = vmax.f32 %v364, 0.0
    %v367 = vpack.c.bf16 %v366, %v365
    %v368 = vld [vmem:[#allocation11] sm:$0xf]
    %v369 = vld [vmem:[#allocation11 + $0x4] sm:$0xf]
    %v370 = vld [vmem:[#allocation11 + $0x8] sm:$0xf]
    %v371 = vld [vmem:[#allocation11 + $0xc] sm:$0xf]
    %v372 = vld [vmem:[#allocation11 + $0x10] sm:$0xf]
    %v373 = vld [vmem:[#allocation11 + $0x14] sm:$0xf]
    %v374 = vld [vmem:[#allocation11 + $0x18] sm:$0xf]
    %v375 = vld [vmem:[#allocation11 + $0x1c] sm:$0xf]
    %v376 = vld [vmem:[#allocation11 + $0x20] sm:$0xf]
    %v377 = vld [vmem:[#allocation11 + $0x24] sm:$0xf]
    %v378 = vld [vmem:[#allocation11 + $0x28] sm:$0xf]
    %v379 = vld [vmem:[#allocation11 + $0x2c] sm:$0xf]
    %v380 = vld [vmem:[#allocation11 + $0x30] sm:$0xf]
    %v381 = vld [vmem:[#allocation11 + $0x34] sm:$0xf]
    %v382 = vld [vmem:[#allocation11 + $0x38] sm:$0xf]
    %v383 = vld [vmem:[#allocation11 + $0x3c] sm:$0xf]
    %v400 = vunpack.c.l.b16 %v368
    %v401 = vunpack.c.l.b16 %v369
    %v402 = vunpack.c.l.b16 %v370
    %v403 = vunpack.c.l.b16 %v371
    %v404 = vunpack.c.l.b16 %v372
    %v405 = vunpack.c.l.b16 %v373
    %v406 = vunpack.c.l.b16 %v374
    %v407 = vunpack.c.l.b16 %v375
    %v408 = vunpack.c.l.b16 %v376
    %v409 = vunpack.c.l.b16 %v377
    %v410 = vunpack.c.l.b16 %v378
    %v411 = vunpack.c.l.b16 %v379
    %v412 = vunpack.c.l.b16 %v380
    %v413 = vunpack.c.l.b16 %v381
    %v414 = vunpack.c.l.b16 %v382
    %v415 = vunpack.c.l.b16 %v383
    %v416 = vpack.c.b16 %v401, %v400
    %v417 = vpack.c.b16 %v403, %v402
    %v418 = vpack.c.b16 %v405, %v404
    %v419 = vpack.c.b16 %v407, %v406
    %v420 = vpack.c.b16 %v409, %v408
    %v421 = vpack.c.b16 %v411, %v410
    %v422 = vpack.c.b16 %v413, %v412
    %v423 = vpack.c.b16 %v415, %v414
    %432 = vmatprep.subr.bf16.mxu0 0
    %433 = vmatpush1.bf16.msra.mxu0 %v423
    %434 = vmatprep.subr.bf16.mxu0 0
    %435 = vmatpush1.bf16.msra.mxu0 %v422
    %436 = vmatprep.subr.bf16.mxu0 0
    %437 = vmatpush1.bf16.msra.mxu0 %v421
    %438 = vmatprep.subr.bf16.mxu0 0
    %439 = vmatpush1.bf16.msra.mxu0 %v420
    %440 = vmatprep.subr.bf16.mxu0 0
    %441 = vmatpush1.bf16.msra.mxu0 %v419
    %442 = vmatprep.subr.bf16.mxu0 0
    %443 = vmatpush1.bf16.msra.mxu0 %v418
    %444 = vmatprep.subr.bf16.mxu0 0
    %445 = vmatpush1.bf16.msra.mxu0 %v417
    %446 = vmatprep.subr.bf16.mxu0 0
    %447 = vmatpush1.bf16.msra.mxu0 %v416
    %448 = vmatprep.subr.bf16.mxu0 0
    %449 = vmatpush2.bf16.msra.mxu0 0
    %450 = vmatprep.subr.bf16.mxu0 0
    %451 = vmatpush2.bf16.msra.mxu0 0
    %452 = vmatprep.subr.bf16.mxu0 0
    %453 = vmatpush2.bf16.msra.mxu0 0
    %454 = vmatprep.subr.bf16.mxu0 0
    %455 = vmatpush2.bf16.msra.mxu0 0
    %456 = vmatprep.subr.bf16.mxu0 0
    %457 = vmatpush2.bf16.msra.mxu0 0
    %458 = vmatprep.subr.bf16.mxu0 0
    %459 = vmatpush2.bf16.msra.mxu0 0
    %460 = vmatprep.subr.bf16.mxu0 0
    %461 = vmatpush2.bf16.msra.mxu0 0
    %462 = vmatprep.subr.bf16.mxu0 0
    %463 = vmatpush2.bf16.msra.mxu0 0
    %464 = vmatprep.mubr.bf16.mxu0 0
    %465 = vmatmul.mubr.bf16.gmra.mxu0 %v367
    %v466 = vpop.f32.mrf.mxu0
    %v467 = vadd.f32 %v201, %v466
    %v468 = vpop.f32.mrf.mxu0
    %v469 = vpop.f32.mrf.mxu0
    %v470 = vadd.f32 %v201, %v469
    %v471 = vpop.f32.mrf.mxu0
    %472 = vdwg.mxu0
    %v473 = vmax.f32 %v467, 0.0
    %v474 = vmax.f32 %v470, 0.0
    %v475 = vpack.c.bf16 %v474, %v473
    %v476 = vld [vmem:[#allocation13] sm:$0xff]
    %v477 = vld [vmem:[#allocation13 + $0x8] sm:$0xff]
    %v478 = vld [vmem:[#allocation13 + $0x10] sm:$0xff]
    %v479 = vld [vmem:[#allocation13 + $0x18] sm:$0xff]
    %v480 = vld [vmem:[#allocation13 + $0x20] sm:$0xff]
    %v481 = vld [vmem:[#allocation13 + $0x28] sm:$0xff]
    %v482 = vld [vmem:[#allocation13 + $0x30] sm:$0xff]
    %v483 = vld [vmem:[#allocation13 + $0x38] sm:$0xff]
    %v484 = vld [vmem:[#allocation13 + $0x40] sm:$0xff]
    %v485 = vld [vmem:[#allocation13 + $0x48] sm:$0xff]
    %v486 = vld [vmem:[#allocation13 + $0x50] sm:$0xff]
    %v487 = vld [vmem:[#allocation13 + $0x58] sm:$0xff]
    %v488 = vld [vmem:[#allocation13 + $0x60] sm:$0xff]
    %v489 = vld [vmem:[#allocation13 + $0x68] sm:$0xff]
    %v490 = vld [vmem:[#allocation13 + $0x70] sm:$0xff]
    %v491 = vld [vmem:[#allocation13 + $0x78] sm:$0xff]
    %v493 = vlaneseq
    %v494 = vshrl.u32 %v493, 7
    %v495 = vsub.s32 0, %v494
    %v496 = vrot.slane %v203, %v495
    %v497 = vlaneseq
    %v498 = vshrl.u32 %v497, 7
    %v499 = vsub.s32 1, %v498
    %v500 = vrot.slane %v203, %v499
    %v519 = vunpack.c.l.b16 %v476
    %v520 = vunpack.c.h.b16 %v476
    %v521 = vunpack.c.l.b16 %v477
    %v522 = vunpack.c.h.b16 %v477
    %v523 = vunpack.c.l.b16 %v478
    %v524 = vunpack.c.h.b16 %v478
    %v525 = vunpack.c.l.b16 %v479
    %v526 = vunpack.c.h.b16 %v479
    %v527 = vunpack.c.l.b16 %v480
    %v528 = vunpack.c.h.b16 %v480
    %v529 = vunpack.c.l.b16 %v481
    %v530 = vunpack.c.h.b16 %v481
    %v531 = vunpack.c.l.b16 %v482
    %v532 = vunpack.c.h.b16 %v482
    %v533 = vunpack.c.l.b16 %v483
    %v534 = vunpack.c.h.b16 %v483
    %v535 = vunpack.c.l.b16 %v484
    %v536 = vunpack.c.h.b16 %v484
    %v537 = vunpack.c.l.b16 %v485
    %v538 = vunpack.c.h.b16 %v485
    %v539 = vunpack.c.l.b16 %v486
    %v540 = vunpack.c.h.b16 %v486
    %v541 = vunpack.c.l.b16 %v487
    %v542 = vunpack.c.h.b16 %v487
    %v543 = vunpack.c.l.b16 %v488
    %v544 = vunpack.c.h.b16 %v488
    %v545 = vunpack.c.l.b16 %v489
    %v546 = vunpack.c.h.b16 %v489
    %v547 = vunpack.c.l.b16 %v490
    %v548 = vunpack.c.h.b16 %v490
    %v549 = vunpack.c.l.b16 %v491
    %v550 = vunpack.c.h.b16 %v491
    %v551 = vpack.c.b16 %v521, %v519
    %v552 = vpack.c.b16 %v522, %v520
    %v553 = vpack.c.b16 %v525, %v523
    %v554 = vpack.c.b16 %v526, %v524
    %v555 = vpack.c.b16 %v529, %v527
    %v556 = vpack.c.b16 %v530, %v528
    %v557 = vpack.c.b16 %v533, %v531
    %v558 = vpack.c.b16 %v534, %v532
    %v559 = vpack.c.b16 %v537, %v535
    %v560 = vpack.c.b16 %v538, %v536
    %v561 = vpack.c.b16 %v541, %v539
    %v562 = vpack.c.b16 %v542, %v540
    %v563 = vpack.c.b16 %v545, %v543
    %v564 = vpack.c.b16 %v546, %v544
    %v565 = vpack.c.b16 %v549, %v547
    %v566 = vpack.c.b16 %v550, %v548
    %583 = vmatprep.subr.bf16.mxu0 %v566
    %584 = vmatpush1.bf16.msra.mxu0 %v565
    %585 = vmatprep.subr.bf16.mxu0 %v564
    %586 = vmatpush1.bf16.msra.mxu0 %v563
    %587 = vmatprep.subr.bf16.mxu0 %v562
    %588 = vmatpush1.bf16.msra.mxu0 %v561
    %589 = vmatprep.subr.bf16.mxu0 %v560
    %590 = vmatpush1.bf16.msra.mxu0 %v559
    %591 = vmatprep.subr.bf16.mxu0 %v558
    %592 = vmatpush1.bf16.msra.mxu0 %v557
    %593 = vmatprep.subr.bf16.mxu0 %v556
    %594 = vmatpush1.bf16.msra.mxu0 %v555
    %595 = vmatprep.subr.bf16.mxu0 %v554
    %596 = vmatpush1.bf16.msra.mxu0 %v553
    %597 = vmatprep.subr.bf16.mxu0 %v552
    %598 = vmatpush1.bf16.msra.mxu0 %v551
    %599 = vmatprep.subr.bf16.mxu0 0
    %600 = vmatpush2.bf16.msra.mxu0 0
    %601 = vmatprep.subr.bf16.mxu0 0
    %602 = vmatpush2.bf16.msra.mxu0 0
    %603 = vmatprep.subr.bf16.mxu0 0
    %604 = vmatpush2.bf16.msra.mxu0 0
    %605 = vmatprep.subr.bf16.mxu0 0
    %606 = vmatpush2.bf16.msra.mxu0 0
    %607 = vmatprep.subr.bf16.mxu0 0
    %608 = vmatpush2.bf16.msra.mxu0 0
    %609 = vmatprep.subr.bf16.mxu0 0
    %610 = vmatpush2.bf16.msra.mxu0 0
    %611 = vmatprep.subr.bf16.mxu0 0
    %612 = vmatpush2.bf16.msra.mxu0 0
    %613 = vmatprep.subr.bf16.mxu0 0
    %614 = vmatpush2.bf16.msra.mxu0 0
    %615 = vmatprep.mubr.bf16.mxu0 0
    %616 = vmatmul.mubr.bf16.gmra.mxu0 %v475
    %v617 = vpop.f32.mrf.mxu0
    %v618 = vadd.f32 %v496, %v617
    %v619 = vpop.f32.mrf.mxu0
    %v620 = vadd.f32 %v500, %v619
    %v621 = vpop.f32.mrf.mxu0
    %v622 = vadd.f32 %v496, %v621
    %v623 = vpop.f32.mrf.mxu0
    %v624 = vadd.f32 %v500, %v623
    %625 = vdwg.mxu0
    %v626 = vmax.f32 %v620, -4.0
    %v627 = vmax.f32 %v624, -4.0
    %v628 = vmin.f32 %v626, 15.0
    %v629 = vmin.f32 %v627, 15.0
    %v630 = vmul.f32 %v628, 1.442695
    %v631 = vpow.pop %v630
    %v632 = vmul.f32 %v629, 1.442695
    %v633 = vpow.pop %v632
    %v634 = vld [vmem:[#allocation7] sm:$0xff]
    %v635 = vld [vmem:[#allocation7 + $0x8] sm:$0xff]
    %v636 = vmul.f32 %v631, %v634
    %v637 = vmul.f32 %v633, %v635
    %v638 = vadd.f32 %v618, %v636
    %v639 = vadd.f32 %v622, %v637
    %v640 = vld [vmem:[#allocation14] sm:$0xf]
    %v641 = vld [vmem:[#allocation14 + $0x4] sm:$0xf]
    %v642 = vld [vmem:[#allocation14 + $0x8] sm:$0xf]
    %v643 = vld [vmem:[#allocation14 + $0xc] sm:$0xf]
    %v644 = vld [vmem:[#allocation14 + $0x10] sm:$0xf]
    %v645 = vld [vmem:[#allocation14 + $0x14] sm:$0xf]
    %v646 = vld [vmem:[#allocation14 + $0x18] sm:$0xf]
    %v647 = vld [vmem:[#allocation14 + $0x1c] sm:$0xf]
    %v648 = vld [vmem:[#allocation14 + $0x20] sm:$0xf]
    %v649 = vld [vmem:[#allocation14 + $0x24] sm:$0xf]
    %v650 = vpack.c.bf16 %v639, %v638
    %v651 = vld [vmem:[#allocation16] sm:$0xf]
    %v652 = vld [vmem:[#allocation16 + $0x4] sm:$0xf]
    %v653 = vld [vmem:[#allocation16 + $0x8] sm:$0xf]
    %v654 = vld [vmem:[#allocation16 + $0xc] sm:$0xf]
    %v655 = vld [vmem:[#allocation16 + $0x10] sm:$0xf]
    %v656 = vld [vmem:[#allocation16 + $0x14] sm:$0xf]
    %v657 = vld [vmem:[#allocation16 + $0x18] sm:$0xf]
    %v658 = vld [vmem:[#allocation16 + $0x1c] sm:$0xf]
    %v659 = vld [vmem:[#allocation16 + $0x20] sm:$0xf]
    %v660 = vld [vmem:[#allocation16 + $0x24] sm:$0xf]
    %v661 = vld [vmem:[#allocation16 + $0x28] sm:$0xf]
    %v662 = vld [vmem:[#allocation16 + $0x2c] sm:$0xf]
    %v663 = vld [vmem:[#allocation16 + $0x30] sm:$0xf]
    %v664 = vld [vmem:[#allocation16 + $0x34] sm:$0xf]
    %v665 = vld [vmem:[#allocation16 + $0x38] sm:$0xf]
    %v666 = vld [vmem:[#allocation16 + $0x3c] sm:$0xf]
    %v683 = vunpack.c.l.b16 %v651
    %v684 = vunpack.c.l.b16 %v652
    %v685 = vunpack.c.l.b16 %v653
    %v686 = vunpack.c.l.b16 %v654
    %v687 = vunpack.c.l.b16 %v655
    %v688 = vunpack.c.l.b16 %v656
    %v689 = vunpack.c.l.b16 %v657
    %v690 = vunpack.c.l.b16 %v658
    %v691 = vunpack.c.l.b16 %v659
    %v692 = vunpack.c.l.b16 %v660
    %v693 = vunpack.c.l.b16 %v661
    %v694 = vunpack.c.l.b16 %v662
    %v695 = vunpack.c.l.b16 %v663
    %v696 = vunpack.c.l.b16 %v664
    %v697 = vunpack.c.l.b16 %v665
    %v698 = vunpack.c.l.b16 %v666
    %v699 = vpack.c.b16 %v684, %v683
    %v700 = vpack.c.b16 %v686, %v685
    %v701 = vpack.c.b16 %v688, %v687
    %v702 = vpack.c.b16 %v690, %v689
    %v703 = vpack.c.b16 %v692, %v691
    %v704 = vpack.c.b16 %v694, %v693
    %v705 = vpack.c.b16 %v696, %v695
    %v706 = vpack.c.b16 %v698, %v697
    %715 = vmatprep.subr.bf16.mxu0 0
    %716 = vmatpush1.bf16.msra.mxu0 %v706
    %717 = vmatprep.subr.bf16.mxu0 0
    %718 = vmatpush1.bf16.msra.mxu0 %v705
    %719 = vmatprep.subr.bf16.mxu0 0
    %720 = vmatpush1.bf16.msra.mxu0 %v704
    %721 = vmatprep.subr.bf16.mxu0 0
    %722 = vmatpush1.bf16.msra.mxu0 %v703
    %723 = vmatprep.subr.bf16.mxu0 0
    %724 = vmatpush1.bf16.msra.mxu0 %v702
    %725 = vmatprep.subr.bf16.mxu0 0
    %726 = vmatpush1.bf16.msra.mxu0 %v701
    %727 = vmatprep.subr.bf16.mxu0 0
    %728 = vmatpush1.bf16.msra.mxu0 %v700
    %729 = vmatprep.subr.bf16.mxu0 0
    %730 = vmatpush1.bf16.msra.mxu0 %v699
    %731 = vmatprep.subr.bf16.mxu0 0
    %732 = vmatpush2.bf16.msra.mxu0 0
    %733 = vmatprep.subr.bf16.mxu0 0
    %734 = vmatpush2.bf16.msra.mxu0 0
    %735 = vmatprep.subr.bf16.mxu0 0
    %736 = vmatpush2.bf16.msra.mxu0 0
    %737 = vmatprep.subr.bf16.mxu0 0
    %738 = vmatpush2.bf16.msra.mxu0 0
    %739 = vmatprep.subr.bf16.mxu0 0
    %740 = vmatpush2.bf16.msra.mxu0 0
    %741 = vmatprep.subr.bf16.mxu0 0
    %742 = vmatpush2.bf16.msra.mxu0 0
    %743 = vmatprep.subr.bf16.mxu0 0
    %744 = vmatpush2.bf16.msra.mxu0 0
    %745 = vmatprep.subr.bf16.mxu0 0
    %746 = vmatpush2.bf16.msra.mxu0 0
    %747 = vmatprep.mubr.bf16.mxu0 0
    %748 = vmatmul.mubr.bf16.gmra.mxu0 %v650
    %v749 = vpop.f32.mrf.mxu0
    %v750 = vadd.f32 0.0, %v749
    %v751 = vpop.f32.mrf.mxu0
    %v752 = vpop.f32.mrf.mxu0
    %v753 = vadd.f32 0.0, %v752
    %v754 = vpop.f32.mrf.mxu0
    %755 = vdwg.mxu0
    %v766 = vunpack.c.l.b16 %v640
    %v767 = vunpack.c.l.b16 %v641
    %v768 = vunpack.c.l.b16 %v642
    %v769 = vunpack.c.l.b16 %v643
    %v770 = vunpack.c.l.b16 %v644
    %v771 = vunpack.c.l.b16 %v645
    %v772 = vunpack.c.l.b16 %v646
    %v773 = vunpack.c.l.b16 %v647
    %v774 = vunpack.c.l.b16 %v648
    %v775 = vunpack.c.l.b16 %v649
    %v776 = vpack.c.b16 %v767, %v766
    %v777 = vpack.c.b16 %v769, %v768
    %v778 = vpack.c.b16 %v771, %v770
    %v779 = vpack.c.b16 %v773, %v772
    %v780 = vpack.c.b16 %v775, %v774
    %786 = vmatprep.subr.bf16.mxu0 0
    %787 = vmatpush1.bf16.msra.mxu0 0
    %788 = vmatprep.subr.bf16.mxu0 0
    %789 = vmatpush1.bf16.msra.mxu0 0
    %790 = vmatprep.subr.bf16.mxu0 0
    %791 = vmatpush1.bf16.msra.mxu0 0
    %792 = vmatprep.subr.bf16.mxu0 0
    %793 = vmatpush1.bf16.msra.mxu0 %v780
    %794 = vmatprep.subr.bf16.mxu0 0
    %795 = vmatpush1.bf16.msra.mxu0 %v779
    %796 = vmatprep.subr.bf16.mxu0 0
    %797 = vmatpush1.bf16.msra.mxu0 %v778
    %798 = vmatprep.subr.bf16.mxu0 0
    %799 = vmatpush1.bf16.msra.mxu0 %v777
    %800 = vmatprep.subr.bf16.mxu0 0
    %801 = vmatpush1.bf16.msra.mxu0 %v776
    %802 = vmatprep.subr.bf16.mxu0 0
    %803 = vmatpush2.bf16.msra.mxu0 0
    %804 = vmatprep.subr.bf16.mxu0 0
    %805 = vmatpush2.bf16.msra.mxu0 0
    %806 = vmatprep.subr.bf16.mxu0 0
    %807 = vmatpush2.bf16.msra.mxu0 0
    %808 = vmatprep.subr.bf16.mxu0 0
    %809 = vmatpush2.bf16.msra.mxu0 0
    %810 = vmatprep.subr.bf16.mxu0 0
    %811 = vmatpush2.bf16.msra.mxu0 0
    %812 = vmatprep.subr.bf16.mxu0 0
    %813 = vmatpush2.bf16.msra.mxu0 0
    %814 = vmatprep.subr.bf16.mxu0 0
    %815 = vmatpush2.bf16.msra.mxu0 0
    %816 = vmatprep.subr.bf16.mxu0 0
    %817 = vmatpush2.bf16.msra.mxu0 0
    %818 = vmatprep.mubr.bf16.mxu0 0
    %819 = vmatmul.mubr.bf16.gmra.mxu0 %v320
    %v820 = vpop.f32.mrf.mxu0
    %v821 = vadd.f32 %v750, %v820
    %v822 = vpop.f32.mrf.mxu0
    %v823 = vpop.f32.mrf.mxu0
    %v824 = vadd.f32 %v753, %v823
    %v825 = vpop.f32.mrf.mxu0
    %826 = vdwg.mxu0
    %v827 = vadd.f32 %v821, %v204
    %v828 = vadd.f32 %v824, %v204
    %v829 = vmax.f32 %v827, 0.0
    %v830 = vmax.f32 %v828, 0.0
    %v831 = vpack.c.bf16 %v830, %v829
    %v832 = vld [vmem:[#allocation17] sm:$0xf]
    %v833 = vld [vmem:[#allocation17 + $0x4] sm:$0xf]
    %v834 = vld [vmem:[#allocation17 + $0x8] sm:$0xf]
    %v835 = vld [vmem:[#allocation17 + $0xc] sm:$0xf]
    %v836 = vld [vmem:[#allocation17 + $0x10] sm:$0xf]
    %v837 = vld [vmem:[#allocation17 + $0x14] sm:$0xf]
    %v838 = vld [vmem:[#allocation17 + $0x18] sm:$0xf]
    %v839 = vld [vmem:[#allocation17 + $0x1c] sm:$0xf]
    %v840 = vld [vmem:[#allocation17 + $0x20] sm:$0xf]
    %v841 = vld [vmem:[#allocation17 + $0x24] sm:$0xf]
    %v842 = vld [vmem:[#allocation17 + $0x28] sm:$0xf]
    %v843 = vld [vmem:[#allocation17 + $0x2c] sm:$0xf]
    %v844 = vld [vmem:[#allocation17 + $0x30] sm:$0xf]
    %v845 = vld [vmem:[#allocation17 + $0x34] sm:$0xf]
    %v846 = vld [vmem:[#allocation17 + $0x38] sm:$0xf]
    %v847 = vld [vmem:[#allocation17 + $0x3c] sm:$0xf]
    %v864 = vunpack.c.l.b16 %v832
    %v865 = vunpack.c.l.b16 %v833
    %v866 = vunpack.c.l.b16 %v834
    %v867 = vunpack.c.l.b16 %v835
    %v868 = vunpack.c.l.b16 %v836
    %v869 = vunpack.c.l.b16 %v837
    %v870 = vunpack.c.l.b16 %v838
    %v871 = vunpack.c.l.b16 %v839
    %v872 = vunpack.c.l.b16 %v840
    %v873 = vunpack.c.l.b16 %v841
    %v874 = vunpack.c.l.b16 %v842
    %v875 = vunpack.c.l.b16 %v843
    %v876 = vunpack.c.l.b16 %v844
    %v877 = vunpack.c.l.b16 %v845
    %v878 = vunpack.c.l.b16 %v846
    %v879 = vunpack.c.l.b16 %v847
    %v880 = vpack.c.b16 %v865, %v864
    %v881 = vpack.c.b16 %v867, %v866
    %v882 = vpack.c.b16 %v869, %v868
    %v883 = vpack.c.b16 %v871, %v870
    %v884 = vpack.c.b16 %v873, %v872
    %v885 = vpack.c.b16 %v875, %v874
    %v886 = vpack.c.b16 %v877, %v876
    %v887 = vpack.c.b16 %v879, %v878
    %896 = vmatprep.subr.bf16.mxu0 0
    %897 = vmatpush1.bf16.msra.mxu0 %v887
    %898 = vmatprep.subr.bf16.mxu0 0
    %899 = vmatpush1.bf16.msra.mxu0 %v886
    %900 = vmatprep.subr.bf16.mxu0 0
    %901 = vmatpush1.bf16.msra.mxu0 %v885
    %902 = vmatprep.subr.bf16.mxu0 0
    %903 = vmatpush1.bf16.msra.mxu0 %v884
    %904 = vmatprep.subr.bf16.mxu0 0
    %905 = vmatpush1.bf16.msra.mxu0 %v883
    %906 = vmatprep.subr.bf16.mxu0 0
    %907 = vmatpush1.bf16.msra.mxu0 %v882
    %908 = vmatprep.subr.bf16.mxu0 0
    %909 = vmatpush1.bf16.msra.mxu0 %v881
    %910 = vmatprep.subr.bf16.mxu0 0
    %911 = vmatpush1.bf16.msra.mxu0 %v880
    %912 = vmatprep.subr.bf16.mxu0 0
    %913 = vmatpush2.bf16.msra.mxu0 0
    %914 = vmatprep.subr.bf16.mxu0 0
    %915 = vmatpush2.bf16.msra.mxu0 0
    %916 = vmatprep.subr.bf16.mxu0 0
    %917 = vmatpush2.bf16.msra.mxu0 0
    %918 = vmatprep.subr.bf16.mxu0 0
    %919 = vmatpush2.bf16.msra.mxu0 0
    %920 = vmatprep.subr.bf16.mxu0 0
    %921 = vmatpush2.bf16.msra.mxu0 0
    %922 = vmatprep.subr.bf16.mxu0 0
    %923 = vmatpush2.bf16.msra.mxu0 0
    %924 = vmatprep.subr.bf16.mxu0 0
    %925 = vmatpush2.bf16.msra.mxu0 0
    %926 = vmatprep.subr.bf16.mxu0 0
    %927 = vmatpush2.bf16.msra.mxu0 0
    %928 = vmatprep.mubr.bf16.mxu0 0
    %929 = vmatmul.mubr.bf16.gmra.mxu0 %v831
    %v930 = vpop.f32.mrf.mxu0
    %v931 = vadd.f32 %v205, %v930
    %v932 = vpop.f32.mrf.mxu0
    %v933 = vpop.f32.mrf.mxu0
    %v934 = vadd.f32 %v205, %v933
    %v935 = vpop.f32.mrf.mxu0
    %936 = vdwg.mxu0
    %v937 = vmax.f32 %v931, 0.0
    %v938 = vmax.f32 %v934, 0.0
    %v939 = vpack.c.bf16 %v938, %v937
    %v940 = vld [vmem:[#allocation19] sm:$0xf]
    %v941 = vld [vmem:[#allocation19 + $0x4] sm:$0xf]
    %v942 = vld [vmem:[#allocation19 + $0x8] sm:$0xf]
    %v943 = vld [vmem:[#allocation19 + $0xc] sm:$0xf]
    %v944 = vld [vmem:[#allocation19 + $0x10] sm:$0xf]
    %v945 = vld [vmem:[#allocation19 + $0x14] sm:$0xf]
    %v946 = vld [vmem:[#allocation19 + $0x18] sm:$0xf]
    %v947 = vld [vmem:[#allocation19 + $0x1c] sm:$0xf]
    %v948 = vld [vmem:[#allocation19 + $0x20] sm:$0xf]
    %v949 = vld [vmem:[#allocation19 + $0x24] sm:$0xf]
    %v950 = vld [vmem:[#allocation19 + $0x28] sm:$0xf]
    %v951 = vld [vmem:[#allocation19 + $0x2c] sm:$0xf]
    %v952 = vld [vmem:[#allocation19 + $0x30] sm:$0xf]
    %v953 = vld [vmem:[#allocation19 + $0x34] sm:$0xf]
    %v954 = vld [vmem:[#allocation19 + $0x38] sm:$0xf]
    %v955 = vld [vmem:[#allocation19 + $0x3c] sm:$0xf]
    %v972 = vunpack.c.l.b16 %v940
    %v973 = vunpack.c.l.b16 %v941
    %v974 = vunpack.c.l.b16 %v942
    %v975 = vunpack.c.l.b16 %v943
    %v976 = vunpack.c.l.b16 %v944
    %v977 = vunpack.c.l.b16 %v945
    %v978 = vunpack.c.l.b16 %v946
    %v979 = vunpack.c.l.b16 %v947
    %v980 = vunpack.c.l.b16 %v948
    %v981 = vunpack.c.l.b16 %v949
    %v982 = vunpack.c.l.b16 %v950
    %v983 = vunpack.c.l.b16 %v951
    %v984 = vunpack.c.l.b16 %v952
    %v985 = vunpack.c.l.b16 %v953
    %v986 = vunpack.c.l.b16 %v954
    %v987 = vunpack.c.l.b16 %v955
    %v988 = vpack.c.b16 %v973, %v972
    %v989 = vpack.c.b16 %v975, %v974
    %v990 = vpack.c.b16 %v977, %v976
    %v991 = vpack.c.b16 %v979, %v978
    %v992 = vpack.c.b16 %v981, %v980
    %v993 = vpack.c.b16 %v983, %v982
    %v994 = vpack.c.b16 %v985, %v984
    %v995 = vpack.c.b16 %v987, %v986
    %1004 = vmatprep.subr.bf16.mxu0 0
    %1005 = vmatpush1.bf16.msra.mxu0 %v995
    %1006 = vmatprep.subr.bf16.mxu0 0
    %1007 = vmatpush1.bf16.msra.mxu0 %v994
    %1008 = vmatprep.subr.bf16.mxu0 0
    %1009 = vmatpush1.bf16.msra.mxu0 %v993
    %1010 = vmatprep.subr.bf16.mxu0 0
    %1011 = vmatpush1.bf16.msra.mxu0 %v992
    %1012 = vmatprep.subr.bf16.mxu0 0
    %1013 = vmatpush1.bf16.msra.mxu0 %v991
    %1014 = vmatprep.subr.bf16.mxu0 0
    %1015 = vmatpush1.bf16.msra.mxu0 %v990
    %1016 = vmatprep.subr.bf16.mxu0 0
    %1017 = vmatpush1.bf16.msra.mxu0 %v989
    %1018 = vmatprep.subr.bf16.mxu0 0
    %1019 = vmatpush1.bf16.msra.mxu0 %v988
    %1020 = vmatprep.subr.bf16.mxu0 0
    %1021 = vmatpush2.bf16.msra.mxu0 0
    %1022 = vmatprep.subr.bf16.mxu0 0
    %1023 = vmatpush2.bf16.msra.mxu0 0
    %1024 = vmatprep.subr.bf16.mxu0 0
    %1025 = vmatpush2.bf16.msra.mxu0 0
    %1026 = vmatprep.subr.bf16.mxu0 0
    %1027 = vmatpush2.bf16.msra.mxu0 0
    %1028 = vmatprep.subr.bf16.mxu0 0
    %1029 = vmatpush2.bf16.msra.mxu0 0
    %1030 = vmatprep.subr.bf16.mxu0 0
    %1031 = vmatpush2.bf16.msra.mxu0 0
    %1032 = vmatprep.subr.bf16.mxu0 0
    %1033 = vmatpush2.bf16.msra.mxu0 0
    %1034 = vmatprep.subr.bf16.mxu0 0
    %1035 = vmatpush2.bf16.msra.mxu0 0
    %1036 = vmatprep.mubr.bf16.mxu0 0
    %1037 = vmatmul.mubr.bf16.gmra.mxu0 %v939
    %v1038 = vpop.f32.mrf.mxu0
    %v1039 = vadd.f32 %v206, %v1038
    %v1040 = vpop.f32.mrf.mxu0
    %v1041 = vpop.f32.mrf.mxu0
    %v1042 = vadd.f32 %v206, %v1041
    %v1043 = vpop.f32.mrf.mxu0
    %1044 = vdwg.mxu0
    %1045 = vst [vmem:[#allocation20] sm:$0xff] %v1039
    %1046 = vst [vmem:[#allocation20 + $0x8] sm:$0xff] %v1042
    %1047 = vst [vmem:[#allocation21] sm:$0xff] %v618
    %1048 = vst [vmem:[#allocation21 + $0x8] sm:$0xff] %v622
    %1049 = vst [vmem:[#allocation23] sm:$0xff] %v631
    %1050 = vst [vmem:[#allocation23 + $0x8] sm:$0xff] %v633
    // Predicated region
    $region94: #{tpu_custom_call.1} parent=1 // pred_check
      _
    $region95: #{tpu_custom_call.1} parent=1 // pred_check_branch
      %1052 = sbr.rel (0) target = $region97
    $region96: #{tpu_custom_call.1} parent=1 // pred_region
      %s1054 = ssub.s32 256, 256
      %1055 = vsyncadd [#allocation4], %s1054
      %s1056 = sshll.u32 [#allocation20], 4
      %s1057 = int_to_ptr.vmem [resolvable:$true] %s1056
      %1062 = dma.vmem_to_hbm [thread:$0]  %s1057, 256, %s12, [#allocation4], 128, 128, 8
    $region97: #{tpu_custom_call.1} parent=1 // pred_fallthru
      _
    // Predicated region
    $region98: #{tpu_custom_call.1} parent=1 // pred_check
      _
    $region99: #{tpu_custom_call.1} parent=1 // pred_check_branch
      %1064 = sbr.rel (0) target = $region101
    $region100: #{tpu_custom_call.1} parent=1 // pred_region
      %s1066 = ssub.s32 256, 256
      %1067 = vsyncadd [#allocation22], %s1066
      %s1068 = sshll.u32 [#allocation21], 4
      %s1069 = int_to_ptr.vmem [resolvable:$true] %s1068
      %1074 = dma.vmem_to_hbm [thread:$0]  %s1069, 256, %s13, [#allocation22], 128, 128, 8
    $region101: #{tpu_custom_call.1} parent=1 // pred_fallthru
      _
    // Predicated region
    $region102: #{tpu_custom_call.1} parent=1 // pred_check
      _
    $region103: #{tpu_custom_call.1} parent=1 // pred_check_branch
      %1076 = sbr.rel (0) target = $region105
    $region104: #{tpu_custom_call.1} parent=1 // pred_region
      %s1078 = ssub.s32 256, 256
      %1079 = vsyncadd [#allocation22], %s1078
      %s1080 = sshll.u32 [#allocation23], 4
      %s1081 = int_to_ptr.vmem [resolvable:$true] %s1080
      %1086 = dma.vmem_to_hbm [thread:$0]  %s1081, 256, %s14, [#allocation22], 128, 128, 8
    $region105: #{tpu_custom_call.1} parent=1 // pred_fallthru
      _
    // Predicated region
    $region106: #{tpu_custom_call.1} parent=1 // pred_check
      _
    $region107: #{tpu_custom_call.1} parent=1 // pred_check_branch
      %1088 = sbr.rel (0) target = $region109
    $region108: #{tpu_custom_call.1} parent=1 // pred_region
      %1089 = dma.done [#allocation4], 256
    $region109: #{tpu_custom_call.1} parent=1 // pred_fallthru
      _
    // Predicated region
    $region110: #{tpu_custom_call.1} parent=1 // pred_check
      _
    $region111: #{tpu_custom_call.1} parent=1 // pred_check_branch
      %1091 = sbr.rel (0) target = $region113
    $region112: #{tpu_custom_call.1} parent=1 // pred_region
      %1092 = dma.done [#allocation22], 256
    $region113: #{tpu_custom_call.1} parent=1 // pred_fallthru
      _
    // Predicated region
    $region114: #{tpu_custom_call.1} parent=1 // pred_check
      _
    $region115: #{tpu_custom_call.1} parent=1 // pred_check_branch
      %1094 = sbr.rel (0) target = $region117
    $region116: #{tpu_custom_call.1} parent=1 // pred_region
      %1095 = dma.done [#allocation22], 256
    $region117: #{tpu_custom_call.1} parent=1 // pred_fallthru
      _
    %1096 = vsyncpa [#allocation3], 1
    %1097 = vsyncpa [#allocation6], 1
    %1098 = vsyncpa [#allocation9], 1
    %1099 = vsyncpa [#allocation12], 1
    %1100 = vsyncpa [#allocation15], 1
    %1101 = vsyncpa [#allocation18], 1
    %1102 = vsyncpa [#allocation4], 1
    %1103 = vsyncpa [#allocation22], 1

// kernel: tpu_custom_call.1
$region0: #{tpu_custom_call.1}
  #allocation0 [shape = 'u32[]', space=smem, size = 0x4, offset = 0x4, fixed_abs, tag = 'smem constant byte address 0x4 - core index']
  #allocation1 [shape = 'u32[144,128]{1,0:T(1,128)}', space=vmem, size = 0x12000, scoped, tag = 'internal scratch']
  %s0 = inlined_call_operand.hbm [shape: bf16[16,80], index: 0, kind: input, shape index: {}]
  %s1 = inlined_call_operand.hbm [shape: bf16[16,20], index: 1, kind: input, shape index: {}]
  %s2 = inlined_call_operand.hbm [shape: f32[16,128], index: 2, kind: input, shape index: {}]
  %s3 = inlined_call_operand.hbm [shape: bf16[80,128], index: 3, kind: input, shape index: {}]
  %s4 = inlined_call_operand.hbm [shape: bf16[20,128], index: 4, kind: input, shape index: {}]
  %s5 = inlined_call_operand.hbm [shape: bf16[128,128], index: 5, kind: input, shape index: {}]
  %s6 = inlined_call_operand.hbm [shape: bf16[128,256], index: 6, kind: input, shape index: {}]
  %s7 = inlined_call_operand.hbm [shape: bf16[80,128], index: 7, kind: input, shape index: {}]
  %s8 = inlined_call_operand.hbm [shape: bf16[128,128], index: 8, kind: input, shape index: {}]
  %s9 = inlined_call_operand.hbm [shape: bf16[128,128], index: 9, kind: input, shape index: {}]
  %s10 = inlined_call_operand.hbm [shape: bf16[128,128], index: 10, kind: input, shape index: {}]
  %s11 = inlined_call_operand.vmem [shape: f32[8,256], index: 11, kind: input, shape index: {}]
  %s12 = inlined_call_operand.hbm [shape: f32[16,128], index: 12, kind: output, shape index: {0}]
  %s13 = inlined_call_operand.hbm [shape: f32[16,128], index: 13, kind: output, shape index: {1}]
  %s14 = inlined_call_operand.hbm [shape: f32[16,128], index: 14, kind: output, shape index: {2}]
  %15 = xla_tuple %s12, %s13, %s14
  %s16 = sld [smem:[#allocation0]]
  $region118: #{tpu_custom_call.1} parent=0
    _
  %s18 = ssub.s32 1, %s16
  %s19 = scalar_select 0, %s18, %s16
  $region1: #{tpu_custom_call.1} parent=0
    #allocation2 [shape = 'u8[4096]{0}', space=vmem, size = 0x1000, scoped, tag = 'input window, operand 0, single buffered']
    #allocation3 [shape = 's32[1]{0}', space=sflag, size = 0x4, scoped, tag = 'scoped memory for tpu_custom_call.1']
    #allocation4 [shape = 's32[1]{0}', space=sflag, size = 0x4, scoped, tag = 'scoped memory for tpu_custom_call.1']
    #allocation5 [shape = 'u8[4096]{0}', space=vmem, size = 0x1000, scoped, tag = 'input window, operand 1, single buffered']
    #allocation6 [shape = 's32[1]{0}', space=sflag, size = 0x4, scoped, tag = 'scoped memory for tpu_custom_call.1']
    #allocation7 [shape = 'u8[8192]{0}', space=vmem, size = 0x2000, scoped, tag = 'input window, operand 2, single buffered']
    #allocation8 [shape = 'u8[20480]{0}', space=vmem, size = 0x5000, scoped, tag = 'input window, operand 3, single buffered']
    #allocation9 [shape = 's32[1]{0}', space=sflag, size = 0x4, scoped, tag = 'scoped memory for tpu_custom_call.1']
    #allocation10 [shape = 'u8[6144]{0}', space=vmem, size = 0x1800, scoped, tag = 'input window, operand 4, single buffered']
    #allocation11 [shape = 'u8[32768]{0}', space=vmem, size = 0x8000, scoped, tag = 'input window, operand 5, single buffered']
    #allocation12 [shape = 's32[1]{0}', space=sflag, size = 0x4, scoped, tag = 'scoped memory for tpu_custom_call.1']
    #allocation13 [shape = 'u8[65536]{0}', space=vmem, size = 0x10000, scoped, tag = 'input window, operand 6, single buffered']
    #allocation14 [shape = 'u8[20480]{0}', space=vmem, size = 0x5000, scoped, tag = 'input window, operand 7, single buffered']
    #allocation15 [shape = 's32[1]{0}', space=sflag, size = 0x4, scoped, tag = 'scoped memory for tpu_custom_call.1']
    #allocation16 [shape = 'u8[32768]{0}', space=vmem, size = 0x8000, scoped, tag = 'input window, operand 8, single buffered']
    #allocation17 [shape = 'u8[32768]{0}', space=vmem, size = 0x8000, scoped, tag = 'input window, operand 9, single buffered']
    #allocation18 [shape = 's32[1]{0}', space=sflag, size = 0x4, scoped, tag = 'scoped memory for tpu_custom_call.1']
    #allocation19 [shape = 'u8[32768]{0}', space=vmem, size = 0x8000, scoped, tag = 'input window, operand 10, single buffered']
    #allocation20 [shape = 'u8[8192]{0}', space=vmem, size = 0x2000, scoped, tag = 'output window, operand 0, single buffered']
    #allocation21 [shape = 'u8[8192]{0}', space=vmem, size = 0x2000, scoped, tag = 'output window, operand 1, single buffered']
    #allocation22 [shape = 's32[1]{0}', space=sflag, size = 0x4, scoped, tag = 'scoped memory for tpu_custom_call.1']
    #allocation23 [shape = 'u8[8192]{0}', space=vmem, size = 0x2000, scoped, tag = 'output window, operand 2, single buffered']
    %20 = vsyncpa [#allocation3], 0
    %21 = vsyncpa [#allocation6], 0
    %22 = vsyncpa [#allocation9], 0
    %23 = vsyncpa [#allocation12], 0
    %24 = vsyncpa [#allocation15], 0
    %25 = vsyncpa [#allocation18], 0
    %26 = vsyncpa [#allocation4], 0
    %27 = vsyncpa [#allocation22], 0
    // Predicated region
    $region2: #{tpu_custom_call.1} parent=1 // pred_check
      _
    $region3: #{tpu_custom_call.1} parent=1 // pred_check_branch
      %29 = sbr.rel (0) target = $region5
    $region4: #{tpu_custom_call.1} parent=1 // pred_region
      %s31 = ssub.s32 128, 128
      %32 = vsyncadd [#allocation3], %s31
      %s33 = sshll.u32 [#allocation2], 4
      %s34 = int_to_ptr.vmem [resolvable:$true] %s33
      %39 = dma.hbm_to_vmem [thread:$0]  %s0, 128, %s34, [#allocation3], 64, 64, 4
    $region5: #{tpu_custom_call.1} parent=1 // pred_fallthru
      _
    // Predicated region
    $region6: #{tpu_custom_call.1} parent=1 // pred_check
      _
    $region7: #{tpu_custom_call.1} parent=1 // pred_check_branch
      %41 = sbr.rel (0) target = $region9
    $region8: #{tpu_custom_call.1} parent=1 // pred_region
      %s43 = ssub.s32 128, 128
      %44 = vsyncadd [#allocation6], %s43
      %s45 = sshll.u32 [#allocation5], 4
      %s46 = int_to_ptr.vmem [resolvable:$true] %s45
      %51 = dma.hbm_to_vmem [thread:$0]  %s1, 128, %s46, [#allocation6], 64, 64, 4
    $region9: #{tpu_custom_call.1} parent=1 // pred_fallthru
      _
    // Predicated region
    $region10: #{tpu_custom_call.1} parent=1 // pred_check
      _
    $region11: #{tpu_custom_call.1} parent=1 // pred_check_branch
      %53 = sbr.rel (0) target = $region13
    $region12: #{tpu_custom_call.1} parent=1 // pred_region
      %s55 = ssub.s32 256, 256
      %56 = vsyncadd [#allocation6], %s55
      %s57 = sshll.u32 [#allocation7], 4
      %s58 = int_to_ptr.vmem [resolvable:$true] %s57
      %63 = dma.hbm_to_vmem [thread:$0]  %s2, 256, %s58, [#allocation6], 128, 128, 8
    $region13: #{tpu_custom_call.1} parent=1 // pred_fallthru
      _
    // Predicated region
    $region14: #{tpu_custom_call.1} parent=1 // pred_check
      _
    $region15: #{tpu_custom_call.1} parent=1 // pred_check_branch
      %65 = sbr.rel (0) target = $region17
    $region16: #{tpu_custom_call.1} parent=1 // pred_region
      %s67 = ssub.s32 640, 640
      %68 = vsyncadd [#allocation9], %s67
      %s69 = sshll.u32 [#allocation8], 4
      %s70 = int_to_ptr.vmem [resolvable:$true] %s69
      %75 = dma.hbm_to_vmem [thread:$0]  %s3, 640, %s70, [#allocation9], 64, 64, 4
    $region17: #{tpu_custom_call.1} parent=1 // pred_fallthru
      _
    // Predicated region
    $region18: #{tpu_custom_call.1} parent=1 // pred_check
      _
    $region19: #{tpu_custom_call.1} parent=1 // pred_check_branch
      %77 = sbr.rel (0) target = $region21
    $region20: #{tpu_custom_call.1} parent=1 // pred_region
      %s79 = ssub.s32 192, 192
      %80 = vsyncadd [#allocation9], %s79
      %s81 = sshll.u32 [#allocation10], 4
      %s82 = int_to_ptr.vmem [resolvable:$true] %s81
      %87 = dma.hbm_to_vmem [thread:$0]  %s4, 192, %s82, [#allocation9], 64, 64, 4
    $region21: #{tpu_custom_call.1} parent=1 // pred_fallthru
      _
    // Predicated region
    $region22: #{tpu_custom_call.1} parent=1 // pred_check
      _
    $region23: #{tpu_custom_call.1} parent=1 // pred_check_branch
      %89 = sbr.rel (0) target = $region25
    $region24: #{tpu_custom_call.1} parent=1 // pred_region
      %s91 = ssub.s32 1024, 1024
      %92 = vsyncadd [#allocation12], %s91
      %s93 = sshll.u32 [#allocation11], 4
      %s94 = int_to_ptr.vmem [resolvable:$true] %s93
      %99 = dma.hbm_to_vmem [thread:$0]  %s5, 1024, %s94, [#allocation12], 64, 64, 4
    $region25: #{tpu_custom_call.1} parent=1 // pred_fallthru
      _
    // Predicated region
    $region26: #{tpu_custom_call.1} parent=1 // pred_check
      _
    $region27: #{tpu_custom_call.1} parent=1 // pred_check_branch
      %101 = sbr.rel (0) target = $region29
    $region28: #{tpu_custom_call.1} parent=1 // pred_region
      %s103 = ssub.s32 2048, 2048
      %104 = vsyncadd [#allocation12], %s103
      %s105 = sshll.u32 [#allocation13], 4
      %s106 = int_to_ptr.vmem [resolvable:$true] %s105
      %111 = dma.hbm_to_vmem [thread:$0]  %s6, 2048, %s106, [#allocation12], 128, 128, 8
    $region29: #{tpu_custom_call.1} parent=1 // pred_fallthru
      _
    // Predicated region
    $region30: #{tpu_custom_call.1} parent=1 // pred_check
      _
    $region31: #{tpu_custom_call.1} parent=1 // pred_check_branch
      %113 = sbr.rel (0) target = $region33
    $region32: #{tpu_custom_call.1} parent=1 // pred_region
      %s115 = ssub.s32 640, 640
      %116 = vsyncadd [#allocation15], %s115
      %s117 = sshll.u32 [#allocation14], 4
      %s118 = int_to_ptr.vmem [resolvable:$true] %s117
      %123 = dma.hbm_to_vmem [thread:$0]  %s7, 640, %s118, [#allocation15], 64, 64, 4
    $region33: #{tpu_custom_call.1} parent=1 // pred_fallthru
      _
    // Predicated region
    $region34: #{tpu_custom_call.1} parent=1 // pred_check
      _
    $region35: #{tpu_custom_call.1} parent=1 // pred_check_branch
      %125 = sbr.rel (0) target = $region37
    $region36: #{tpu_custom_call.1} parent=1 // pred_region
      %s127 = ssub.s32 1024, 1024
      %128 = vsyncadd [#allocation15], %s127
      %s129 = sshll.u32 [#allocation16], 4
      %s130 = int_to_ptr.vmem [resolvable:$true] %s129
      %135 = dma.hbm_to_vmem [thread:$0]  %s8, 1024, %s130, [#allocation15], 64, 64, 4
    $region37: #{tpu_custom_call.1} parent=1 // pred_fallthru
      _
    // Predicated region
    $region38: #{tpu_custom_call.1} parent=1 // pred_check
      _
    $region39: #{tpu_custom_call.1} parent=1 // pred_check_branch
      %137 = sbr.rel (0) target = $region41
    $region40: #{tpu_custom_call.1} parent=1 // pred_region
      %s139 = ssub.s32 1024, 1024
      %140 = vsyncadd [#allocation18], %s139
      %s141 = sshll.u32 [#allocation17], 4
      %s142 = int_to_ptr.vmem [resolvable:$true] %s141
      %147 = dma.hbm_to_vmem [thread:$0]  %s9, 1024, %s142, [#allocation18], 64, 64, 4
    $region41: #{tpu_custom_call.1} parent=1 // pred_fallthru
      _
    // Predicated region
    $region42: #{tpu_custom_call.1} parent=1 // pred_check
      _
    $region43: #{tpu_custom_call.1} parent=1 // pred_check_branch
      %149 = sbr.rel (0) target = $region45
    $region44: #{tpu_custom_call.1} parent=1 // pred_region
      %s151 = ssub.s32 1024, 1024
      %152 = vsyncadd [#allocation18], %s151
      %s153 = sshll.u32 [#allocation19], 4
      %s154 = int_to_ptr.vmem [resolvable:$true] %s153
      %159 = dma.hbm_to_vmem [thread:$0]  %s10, 1024, %s154, [#allocation18], 64, 64, 4
    $region45: #{tpu_custom_call.1} parent=1 // pred_fallthru
      _
    // Predicated region
    $region46: #{tpu_custom_call.1} parent=1 // pred_check
      _
    $region47: #{tpu_custom_call.1} parent=1 // pred_check_branch
      %161 = sbr.rel (0) target = $region49
    $region48: #{tpu_custom_call.1} parent=1 // pred_region
      _
    $region49: #{tpu_custom_call.1} parent=1 // pred_fallthru
      _
    // Predicated region
    $region50: #{tpu_custom_call.1} parent=1 // pred_check
      _
    $region51: #{tpu_custom_call.1} parent=1 // pred_check_branch
      %163 = sbr.rel (0) target = $region53
    $region52: #{tpu_custom_call.1} parent=1 // pred_region
      %164 = dma.done [#allocation3], 128
    $region53: #{tpu_custom_call.1} parent=1 // pred_fallthru
      _
    // Predicated region
    $region54: #{tpu_custom_call.1} parent=1 // pred_check
      _
    $region55: #{tpu_custom_call.1} parent=1 // pred_check_branch
      %166 = sbr.rel (0) target = $region57
    $region56: #{tpu_custom_call.1} parent=1 // pred_region
      %167 = dma.done [#allocation6], 128
    $region57: #{tpu_custom_call.1} parent=1 // pred_fallthru
      _
    // Predicated region
    $region58: #{tpu_custom_call.1} parent=1 // pred_check
      _
    $region59: #{tpu_custom_call.1} parent=1 // pred_check_branch
      %169 = sbr.rel (0) target = $region61
    $region60: #{tpu_custom_call.1} parent=1 // pred_region
      %170 = dma.done [#allocation6], 256
    $region61: #{tpu_custom_call.1} parent=1 // pred_fallthru
      _
    // Predicated region
    $region62: #{tpu_custom_call.1} parent=1 // pred_check
      _
    $region63: #{tpu_custom_call.1} parent=1 // pred_check_branch
      %172 = sbr.rel (0) target = $region65
    $region64: #{tpu_custom_call.1} parent=1 // pred_region
      %173 = dma.done [#allocation9], 640
    $region65: #{tpu_custom_call.1} parent=1 // pred_fallthru
      _
    // Predicated region
    $region66: #{tpu_custom_call.1} parent=1 // pred_check
      _
    $region67: #{tpu_custom_call.1} parent=1 // pred_check_branch
      %175 = sbr.rel (0) target = $region69
    $region68: #{tpu_custom_call.1} parent=1 // pred_region
      %176 = dma.done [#allocation9], 192
    $region69: #{tpu_custom_call.1} parent=1 // pred_fallthru
      _
    // Predicated region
    $region70: #{tpu_custom_call.1} parent=1 // pred_check
      _
    $region71: #{tpu_custom_call.1} parent=1 // pred_check_branch
      %178 = sbr.rel (0) target = $region73
    $region72: #{tpu_custom_call.1} parent=1 // pred_region
      %179 = dma.done [#allocation12], 1024
    $region73: #{tpu_custom_call.1} parent=1 // pred_fallthru
      _
    // Predicated region
    $region74: #{tpu_custom_call.1} parent=1 // pred_check
      _
    $region75: #{tpu_custom_call.1} parent=1 // pred_check_branch
      %181 = sbr.rel (0) target = $region77
    $region76: #{tpu_custom_call.1} parent=1 // pred_region
      %182 = dma.done [#allocation12], 2048
    $region77: #{tpu_custom_call.1} parent=1 // pred_fallthru
      _
    // Predicated region
    $region78: #{tpu_custom_call.1} parent=1 // pred_check
      _
    $region79: #{tpu_custom_call.1} parent=1 // pred_check_branch
      %184 = sbr.rel (0) target = $region81
    $region80: #{tpu_custom_call.1} parent=1 // pred_region
      %185 = dma.done [#allocation15], 640
    $region81: #{tpu_custom_call.1} parent=1 // pred_fallthru
      _
    // Predicated region
    $region82: #{tpu_custom_call.1} parent=1 // pred_check
      _
    $region83: #{tpu_custom_call.1} parent=1 // pred_check_branch
      %187 = sbr.rel (0) target = $region85
    $region84: #{tpu_custom_call.1} parent=1 // pred_region
      %188 = dma.done [#allocation15], 1024
    $region85: #{tpu_custom_call.1} parent=1 // pred_fallthru
      _
    // Predicated region
    $region86: #{tpu_custom_call.1} parent=1 // pred_check
      _
    $region87: #{tpu_custom_call.1} parent=1 // pred_check_branch
      %190 = sbr.rel (0) target = $region89
    $region88: #{tpu_custom_call.1} parent=1 // pred_region
      %191 = dma.done [#allocation18], 1024
    $region89: #{tpu_custom_call.1} parent=1 // pred_fallthru
      _
    // Predicated region
    $region90: #{tpu_custom_call.1} parent=1 // pred_check
      _
    $region91: #{tpu_custom_call.1} parent=1 // pred_check_branch
      %193 = sbr.rel (0) target = $region93
    $region92: #{tpu_custom_call.1} parent=1 // pred_region
      %194 = dma.done [#allocation18], 1024
    $region93: #{tpu_custom_call.1} parent=1 // pred_fallthru
      _
    %v196 = vld [vmem:[#allocation2] sm:$0xf]
    %v197 = vld [vmem:[#allocation2 + $0x4] sm:$0xf]
    %v198 = vld [vmem:[#allocation5] sm:$0xf]
    %v199 = vld [vmem:[#allocation5 + $0x4] sm:$0xf]
    %v200 = vld [vmem:[%s11] ss:$0 sm:$0xff]
    %v201 = vld [vmem:[%s11 + $0x1] ss:$0 sm:$0xff]
    %s202 = scalar_lea.vmem %s11, 2
    %v203 = vld [vmem:[%s202] ss:$8 sm:$0x3]
    %v204 = vld [vmem:[%s11 + $0x3] ss:$0 sm:$0xff]
    %v205 = vld [vmem:[%s11 + $0x4] ss:$0 sm:$0xff]
    %v206 = vld [vmem:[%s11 + $0x5] ss:$0 sm:$0xff]
    %v207 = vld [vmem:[#allocation8] sm:$0xf]
    %v208 = vld [vmem:[#allocation8 + $0x4] sm:$0xf]
    %v209 = vld [vmem:[#allocation8 + $0x8] sm:$0xf]
    %v210 = vld [vmem:[#allocation8 + $0xc] sm:$0xf]
    %v211 = vld [vmem:[#allocation8 + $0x10] sm:$0xf]
    %v212 = vld [vmem:[#allocation8 + $0x14] sm:$0xf]
    %v213 = vld [vmem:[#allocation8 + $0x18] sm:$0xf]
    %v214 = vld [vmem:[#allocation8 + $0x1c] sm:$0xf]
    %v215 = vld [vmem:[#allocation8 + $0x20] sm:$0xf]
    %v216 = vld [vmem:[#allocation8 + $0x24] sm:$0xf]
    %v217 = vld [vmem:[#allocation10] sm:$0xf]
    %v218 = vld [vmem:[#allocation10 + $0x4] sm:$0xf]
    %v219 = vld [vmem:[#allocation10 + $0x8] sm:$0x3]
    %v222 = vunpack.c.l.b16 %v198
    %v223 = vunpack.c.l.b16 %v199
    %v224 = vpack.c.b16 %v223, %v222
    %v228 = vunpack.c.l.b16 %v217
    %v229 = vunpack.c.l.b16 %v218
    %v230 = vunpack.c.l.b16 %v219
    %v231 = vpack.c.b16 %v229, %v228
    %v232 = vpack.c.b16 %v230, %v230
    %vm234 = vcmask 162816
    %v236 = vsel %vm234, %v224, 0
    %vm238 = vcmask 1041408
    %v240 = vsel %vm238, %v232, 0
    %242 = vmatprep.subr.bf16.mxu0 0
    %243 = vmatpush1.bf16.msra.mxu0 0
    %244 = vmatprep.subr.bf16.mxu0 0
    %245 = vmatpush1.bf16.msra.mxu0 0
    %246 = vmatprep.subr.bf16.mxu0 0
    %247 = vmatpush1.bf16.msra.mxu0 0
    %248 = vmatprep.subr.bf16.mxu0 0
    %249 = vmatpush1.bf16.msra.mxu0 0
    %250 = vmatprep.subr.bf16.mxu0 0
    %251 = vmatpush1.bf16.msra.mxu0 0
    %252 = vmatprep.subr.bf16.mxu0 0
    %253 = vmatpush1.bf16.msra.mxu0 0
    %254 = vmatprep.subr.bf16.mxu0 0
    %255 = vmatpush1.bf16.msra.mxu0 %v240
    %256 = vmatprep.subr.bf16.mxu0 0
    %257 = vmatpush1.bf16.msra.mxu0 %v231
    %258 = vmatprep.subr.bf16.mxu0 0
    %259 = vmatpush2.bf16.msra.mxu0 0
    %260 = vmatprep.subr.bf16.mxu0 0
    %261 = vmatpush2.bf16.msra.mxu0 0
    %262 = vmatprep.subr.bf16.mxu0 0
    %263 = vmatpush2.bf16.msra.mxu0 0
    %264 = vmatprep.subr.bf16.mxu0 0
    %265 = vmatpush2.bf16.msra.mxu0 0
    %266 = vmatprep.subr.bf16.mxu0 0
    %267 = vmatpush2.bf16.msra.mxu0 0
    %268 = vmatprep.subr.bf16.mxu0 0
    %269 = vmatpush2.bf16.msra.mxu0 0
    %270 = vmatprep.subr.bf16.mxu0 0
    %271 = vmatpush2.bf16.msra.mxu0 0
    %272 = vmatprep.subr.bf16.mxu0 0
    %273 = vmatpush2.bf16.msra.mxu0 0
    %274 = vmatprep.mubr.bf16.mxu0 0
    %275 = vmatmul.mubr.bf16.gmra.mxu0 %v236
    %v276 = vpop.f32.mrf.mxu0
    %v277 = vadd.f32 0.0, %v276
    %v278 = vpop.f32.mrf.mxu0
    %v279 = vpop.f32.mrf.mxu0
    %v280 = vadd.f32 0.0, %v279
    %v281 = vpop.f32.mrf.mxu0
    %282 = vdwg.mxu0
    %v285 = vunpack.c.l.b16 %v196
    %v286 = vunpack.c.l.b16 %v197
    %v287 = vpack.c.b16 %v286, %v285
    %v298 = vunpack.c.l.b16 %v207
    %v299 = vunpack.c.l.b16 %v208
    %v300 = vunpack.c.l.b16 %v209
    %v301 = vunpack.c.l.b16 %v210
    %v302 = vunpack.c.l.b16 %v211
    %v303 = vunpack.c.l.b16 %v212
    %v304 = vunpack.c.l.b16 %v213
    %v305 = vunpack.c.l.b16 %v214
    %v306 = vunpack.c.l.b16 %v215
    %v307 = vunpack.c.l.b16 %v216
    %v308 = vpack.c.b16 %v299, %v298
    %v309 = vpack.c.b16 %v301, %v300
    %v310 = vpack.c.b16 %v303, %v302
    %v311 = vpack.c.b16 %v305, %v304
    %v312 = vpack.c.b16 %v307, %v306
    %vm318 = vcmask 654336
    %v320 = vsel %vm318, %v287, 0
    %322 = vmatprep.subr.bf16.mxu0 0
    %323 = vmatpush1.bf16.msra.mxu0 0
    %324 = vmatprep.subr.bf16.mxu0 0
    %325 = vmatpush1.bf16.msra.mxu0 0
    %326 = vmatprep.subr.bf16.mxu0 0
    %327 = vmatpush1.bf16.msra.mxu0 0
    %328 = vmatprep.subr.bf16.mxu0 0
    %329 = vmatpush1.bf16.msra.mxu0 %v312
    %330 = vmatprep.subr.bf16.mxu0 0
    %331 = vmatpush1.bf16.msra.mxu0 %v311
    %332 = vmatprep.subr.bf16.mxu0 0
    %333 = vmatpush1.bf16.msra.mxu0 %v310
    %334 = vmatprep.subr.bf16.mxu0 0
    %335 = vmatpush1.bf16.msra.mxu0 %v309
    %336 = vmatprep.subr.bf16.mxu0 0
    %337 = vmatpush1.bf16.msra.mxu0 %v308
    %338 = vmatprep.subr.bf16.mxu0 0
    %339 = vmatpush2.bf16.msra.mxu0 0
    %340 = vmatprep.subr.bf16.mxu0 0
    %341 = vmatpush2.bf16.msra.mxu0 0
    %342 = vmatprep.subr.bf16.mxu0 0
    %343 = vmatpush2.bf16.msra.mxu0 0
    %344 = vmatprep.subr.bf16.mxu0 0
    %345 = vmatpush2.bf16.msra.mxu0 0
    %346 = vmatprep.subr.bf16.mxu0 0
    %347 = vmatpush2.bf16.msra.mxu0 0
    %348 = vmatprep.subr.bf16.mxu0 0
    %349 = vmatpush2.bf16.msra.mxu0 0
    %350 = vmatprep.subr.bf16.mxu0 0
    %351 = vmatpush2.bf16.msra.mxu0 0
    %352 = vmatprep.subr.bf16.mxu0 0
    %353 = vmatpush2.bf16.msra.mxu0 0
    %354 = vmatprep.mubr.bf16.mxu0 0
    %355 = vmatmul.mubr.bf16.gmra.mxu0 %v320
    %v356 = vpop.f32.mrf.mxu0
    %v357 = vadd.f32 %v277, %v356
    %v358 = vpop.f32.mrf.mxu0
    %v359 = vpop.f32.mrf.mxu0
    %v360 = vadd.f32 %v280, %v359
    %v361 = vpop.f32.mrf.mxu0
    %362 = vdwg.mxu0
    %v363 = vadd.f32 %v357, %v200
    %v364 = vadd.f32 %v360, %v200
    %v365 = vmax.f32 %v363, 0.0
    %v366 = vmax.f32 %v364, 0.0
    %v367 = vpack.c.bf16 %v366, %v365
    %v368 = vld [vmem:[#allocation11] sm:$0xf]
    %v369 = vld [vmem:[#allocation11 + $0x4] sm:$0xf]
    %v370 = vld [vmem:[#allocation11 + $0x8] sm:$0xf]
    %v371 = vld [vmem:[#allocation11 + $0xc] sm:$0xf]
    %v372 = vld [vmem:[#allocation11 + $0x10] sm:$0xf]
    %v373 = vld [vmem:[#allocation11 + $0x14] sm:$0xf]
    %v374 = vld [vmem:[#allocation11 + $0x18] sm:$0xf]
    %v375 = vld [vmem:[#allocation11 + $0x1c] sm:$0xf]
    %v376 = vld [vmem:[#allocation11 + $0x20] sm:$0xf]
    %v377 = vld [vmem:[#allocation11 + $0x24] sm:$0xf]
    %v378 = vld [vmem:[#allocation11 + $0x28] sm:$0xf]
    %v379 = vld [vmem:[#allocation11 + $0x2c] sm:$0xf]
    %v380 = vld [vmem:[#allocation11 + $0x30] sm:$0xf]
    %v381 = vld [vmem:[#allocation11 + $0x34] sm:$0xf]
    %v382 = vld [vmem:[#allocation11 + $0x38] sm:$0xf]
    %v383 = vld [vmem:[#allocation11 + $0x3c] sm:$0xf]
    %v400 = vunpack.c.l.b16 %v368
    %v401 = vunpack.c.l.b16 %v369
    %v402 = vunpack.c.l.b16 %v370
    %v403 = vunpack.c.l.b16 %v371
    %v404 = vunpack.c.l.b16 %v372
    %v405 = vunpack.c.l.b16 %v373
    %v406 = vunpack.c.l.b16 %v374
    %v407 = vunpack.c.l.b16 %v375
    %v408 = vunpack.c.l.b16 %v376
    %v409 = vunpack.c.l.b16 %v377
    %v410 = vunpack.c.l.b16 %v378
    %v411 = vunpack.c.l.b16 %v379
    %v412 = vunpack.c.l.b16 %v380
    %v413 = vunpack.c.l.b16 %v381
    %v414 = vunpack.c.l.b16 %v382
    %v415 = vunpack.c.l.b16 %v383
    %v416 = vpack.c.b16 %v401, %v400
    %v417 = vpack.c.b16 %v403, %v402
    %v418 = vpack.c.b16 %v405, %v404
    %v419 = vpack.c.b16 %v407, %v406
    %v420 = vpack.c.b16 %v409, %v408
    %v421 = vpack.c.b16 %v411, %v410
    %v422 = vpack.c.b16 %v413, %v412
    %v423 = vpack.c.b16 %v415, %v414
    %432 = vmatprep.subr.bf16.mxu0 0
    %433 = vmatpush1.bf16.msra.mxu0 %v423
    %434 = vmatprep.subr.bf16.mxu0 0
    %435 = vmatpush1.bf16.msra.mxu0 %v422
    %436 = vmatprep.subr.bf16.mxu0 0
    %437 = vmatpush1.bf16.msra.mxu0 %v421
    %438 = vmatprep.subr.bf16.mxu0 0
    %439 = vmatpush1.bf16.msra.mxu0 %v420
    %440 = vmatprep.subr.bf16.mxu0 0
    %441 = vmatpush1.bf16.msra.mxu0 %v419
    %442 = vmatprep.subr.bf16.mxu0 0
    %443 = vmatpush1.bf16.msra.mxu0 %v418
    %444 = vmatprep.subr.bf16.mxu0 0
    %445 = vmatpush1.bf16.msra.mxu0 %v417
    %446 = vmatprep.subr.bf16.mxu0 0
    %447 = vmatpush1.bf16.msra.mxu0 %v416
    %448 = vmatprep.subr.bf16.mxu0 0
    %449 = vmatpush2.bf16.msra.mxu0 0
    %450 = vmatprep.subr.bf16.mxu0 0
    %451 = vmatpush2.bf16.msra.mxu0 0
    %452 = vmatprep.subr.bf16.mxu0 0
    %453 = vmatpush2.bf16.msra.mxu0 0
    %454 = vmatprep.subr.bf16.mxu0 0
    %455 = vmatpush2.bf16.msra.mxu0 0
    %456 = vmatprep.subr.bf16.mxu0 0
    %457 = vmatpush2.bf16.msra.mxu0 0
    %458 = vmatprep.subr.bf16.mxu0 0
    %459 = vmatpush2.bf16.msra.mxu0 0
    %460 = vmatprep.subr.bf16.mxu0 0
    %461 = vmatpush2.bf16.msra.mxu0 0
    %462 = vmatprep.subr.bf16.mxu0 0
    %463 = vmatpush2.bf16.msra.mxu0 0
    %464 = vmatprep.mubr.bf16.mxu0 0
    %465 = vmatmul.mubr.bf16.gmra.mxu0 %v367
    %v466 = vpop.f32.mrf.mxu0
    %v467 = vadd.f32 %v201, %v466
    %v468 = vpop.f32.mrf.mxu0
    %v469 = vpop.f32.mrf.mxu0
    %v470 = vadd.f32 %v201, %v469
    %v471 = vpop.f32.mrf.mxu0
    %472 = vdwg.mxu0
    %v473 = vmax.f32 %v467, 0.0
    %v474 = vmax.f32 %v470, 0.0
    %v475 = vpack.c.bf16 %v474, %v473
    %v476 = vld [vmem:[#allocation13] sm:$0xff]
    %v477 = vld [vmem:[#allocation13 + $0x8] sm:$0xff]
    %v478 = vld [vmem:[#allocation13 + $0x10] sm:$0xff]
    %v479 = vld [vmem:[#allocation13 + $0x18] sm:$0xff]
    %v480 = vld [vmem:[#allocation13 + $0x20] sm:$0xff]
    %v481 = vld [vmem:[#allocation13 + $0x28] sm:$0xff]
    %v482 = vld [vmem:[#allocation13 + $0x30] sm:$0xff]
    %v483 = vld [vmem:[#allocation13 + $0x38] sm:$0xff]
    %v484 = vld [vmem:[#allocation13 + $0x40] sm:$0xff]
    %v485 = vld [vmem:[#allocation13 + $0x48] sm:$0xff]
    %v486 = vld [vmem:[#allocation13 + $0x50] sm:$0xff]
    %v487 = vld [vmem:[#allocation13 + $0x58] sm:$0xff]
    %v488 = vld [vmem:[#allocation13 + $0x60] sm:$0xff]
    %v489 = vld [vmem:[#allocation13 + $0x68] sm:$0xff]
    %v490 = vld [vmem:[#allocation13 + $0x70] sm:$0xff]
    %v491 = vld [vmem:[#allocation13 + $0x78] sm:$0xff]
    %v493 = vlaneseq
    %v494 = vshrl.u32 %v493, 7
    %v495 = vsub.s32 0, %v494
    %v496 = vrot.slane %v203, %v495
    %v497 = vlaneseq
    %v498 = vshrl.u32 %v497, 7
    %v499 = vsub.s32 1, %v498
    %v500 = vrot.slane %v203, %v499
    %v519 = vunpack.c.l.b16 %v476
    %v520 = vunpack.c.h.b16 %v476
    %v521 = vunpack.c.l.b16 %v477
    %v522 = vunpack.c.h.b16 %v477
    %v523 = vunpack.c.l.b16 %v478
    %v524 = vunpack.c.h.b16 %v478
    %v525 = vunpack.c.l.b16 %v479
    %v526 = vunpack.c.h.b16 %v479
    %v527 = vunpack.c.l.b16 %v480
    %v528 = vunpack.c.h.b16 %v480
    %v529 = vunpack.c.l.b16 %v481
    %v530 = vunpack.c.h.b16 %v481
    %v531 = vunpack.c.l.b16 %v482
    %v532 = vunpack.c.h.b16 %v482
    %v533 = vunpack.c.l.b16 %v483
    %v534 = vunpack.c.h.b16 %v483
    %v535 = vunpack.c.l.b16 %v484
    %v536 = vunpack.c.h.b16 %v484
    %v537 = vunpack.c.l.b16 %v485
    %v538 = vunpack.c.h.b16 %v485
    %v539 = vunpack.c.l.b16 %v486
    %v540 = vunpack.c.h.b16 %v486
    %v541 = vunpack.c.l.b16 %v487
    %v542 = vunpack.c.h.b16 %v487
    %v543 = vunpack.c.l.b16 %v488
    %v544 = vunpack.c.h.b16 %v488
    %v545 = vunpack.c.l.b16 %v489
    %v546 = vunpack.c.h.b16 %v489
    %v547 = vunpack.c.l.b16 %v490
    %v548 = vunpack.c.h.b16 %v490
    %v549 = vunpack.c.l.b16 %v491
    %v550 = vunpack.c.h.b16 %v491
    %v551 = vpack.c.b16 %v521, %v519
    %v552 = vpack.c.b16 %v522, %v520
    %v553 = vpack.c.b16 %v525, %v523
    %v554 = vpack.c.b16 %v526, %v524
    %v555 = vpack.c.b16 %v529, %v527
    %v556 = vpack.c.b16 %v530, %v528
    %v557 = vpack.c.b16 %v533, %v531
    %v558 = vpack.c.b16 %v534, %v532
    %v559 = vpack.c.b16 %v537, %v535
    %v560 = vpack.c.b16 %v538, %v536
    %v561 = vpack.c.b16 %v541, %v539
    %v562 = vpack.c.b16 %v542, %v540
    %v563 = vpack.c.b16 %v545, %v543
    %v564 = vpack.c.b16 %v546, %v544
    %v565 = vpack.c.b16 %v549, %v547
    %v566 = vpack.c.b16 %v550, %v548
    %583 = vmatprep.subr.bf16.mxu0 %v566
    %584 = vmatpush1.bf16.msra.mxu0 %v565
    %585 = vmatprep.subr.bf16.mxu0 %v564
    %586 = vmatpush1.bf16.msra.mxu0 %v563
    %587 = vmatprep.subr.bf16.mxu0 %v562
    %588 = vmatpush1.bf16.msra.mxu0 %v561
    %589 = vmatprep.subr.bf16.mxu0 %v560
    %590 = vmatpush1.bf16.msra.mxu0 %v559
    %591 = vmatprep.subr.bf16.mxu0 %v558
    %592 = vmatpush1.bf16.msra.mxu0 %v557
    %593 = vmatprep.subr.bf16.mxu0 %v556
    %594 = vmatpush1.bf16.msra.mxu0 %v555
    %595 = vmatprep.subr.bf16.mxu0 %v554
    %596 = vmatpush1.bf16.msra.mxu0 %v553
    %597 = vmatprep.subr.bf16.mxu0 %v552
    %598 = vmatpush1.bf16.msra.mxu0 %v551
    %599 = vmatprep.subr.bf16.mxu0 0
    %600 = vmatpush2.bf16.msra.mxu0 0
    %601 = vmatprep.subr.bf16.mxu0 0
    %602 = vmatpush2.bf16.msra.mxu0 0
    %603 = vmatprep.subr.bf16.mxu0 0
    %604 = vmatpush2.bf16.msra.mxu0 0
    %605 = vmatprep.subr.bf16.mxu0 0
    %606 = vmatpush2.bf16.msra.mxu0 0
    %607 = vmatprep.subr.bf16.mxu0 0
    %608 = vmatpush2.bf16.msra.mxu0 0
    %609 = vmatprep.subr.bf16.mxu0 0
    %610 = vmatpush2.bf16.msra.mxu0 0
    %611 = vmatprep.subr.bf16.mxu0 0
    %612 = vmatpush2.bf16.msra.mxu0 0
    %613 = vmatprep.subr.bf16.mxu0 0
    %614 = vmatpush2.bf16.msra.mxu0 0
    %615 = vmatprep.mubr.bf16.mxu0 0
    %616 = vmatmul.mubr.bf16.gmra.mxu0 %v475
    %v617 = vpop.f32.mrf.mxu0
    %v618 = vadd.f32 %v496, %v617
    %v619 = vpop.f32.mrf.mxu0
    %v620 = vadd.f32 %v500, %v619
    %v621 = vpop.f32.mrf.mxu0
    %v622 = vadd.f32 %v496, %v621
    %v623 = vpop.f32.mrf.mxu0
    %v624 = vadd.f32 %v500, %v623
    %625 = vdwg.mxu0
    %v626 = vmax.f32 %v620, -4.0
    %v627 = vmax.f32 %v624, -4.0
    %v628 = vmin.f32 %v626, 15.0
    %v629 = vmin.f32 %v627, 15.0
    %v630 = vmul.f32 %v628, 1.442695
    %v631 = vpow.pop %v630
    %v632 = vmul.f32 %v629, 1.442695
    %v633 = vpow.pop %v632
    %v634 = vld [vmem:[#allocation7] sm:$0xff]
    %v635 = vld [vmem:[#allocation7 + $0x8] sm:$0xff]
    %v636 = vmul.f32 %v631, %v634
    %v637 = vmul.f32 %v633, %v635
    %v638 = vadd.f32 %v618, %v636
    %v639 = vadd.f32 %v622, %v637
    %v640 = vld [vmem:[#allocation14] sm:$0xf]
    %v641 = vld [vmem:[#allocation14 + $0x4] sm:$0xf]
    %v642 = vld [vmem:[#allocation14 + $0x8] sm:$0xf]
    %v643 = vld [vmem:[#allocation14 + $0xc] sm:$0xf]
    %v644 = vld [vmem:[#allocation14 + $0x10] sm:$0xf]
    %v645 = vld [vmem:[#allocation14 + $0x14] sm:$0xf]
    %v646 = vld [vmem:[#allocation14 + $0x18] sm:$0xf]
    %v647 = vld [vmem:[#allocation14 + $0x1c] sm:$0xf]
    %v648 = vld [vmem:[#allocation14 + $0x20] sm:$0xf]
    %v649 = vld [vmem:[#allocation14 + $0x24] sm:$0xf]
    %v650 = vpack.c.bf16 %v639, %v638
    %v651 = vld [vmem:[#allocation16] sm:$0xf]
    %v652 = vld [vmem:[#allocation16 + $0x4] sm:$0xf]
    %v653 = vld [vmem:[#allocation16 + $0x8] sm:$0xf]
    %v654 = vld [vmem:[#allocation16 + $0xc] sm:$0xf]
    %v655 = vld [vmem:[#allocation16 + $0x10] sm:$0xf]
    %v656 = vld [vmem:[#allocation16 + $0x14] sm:$0xf]
    %v657 = vld [vmem:[#allocation16 + $0x18] sm:$0xf]
    %v658 = vld [vmem:[#allocation16 + $0x1c] sm:$0xf]
    %v659 = vld [vmem:[#allocation16 + $0x20] sm:$0xf]
    %v660 = vld [vmem:[#allocation16 + $0x24] sm:$0xf]
    %v661 = vld [vmem:[#allocation16 + $0x28] sm:$0xf]
    %v662 = vld [vmem:[#allocation16 + $0x2c] sm:$0xf]
    %v663 = vld [vmem:[#allocation16 + $0x30] sm:$0xf]
    %v664 = vld [vmem:[#allocation16 + $0x34] sm:$0xf]
    %v665 = vld [vmem:[#allocation16 + $0x38] sm:$0xf]
    %v666 = vld [vmem:[#allocation16 + $0x3c] sm:$0xf]
    %v683 = vunpack.c.l.b16 %v651
    %v684 = vunpack.c.l.b16 %v652
    %v685 = vunpack.c.l.b16 %v653
    %v686 = vunpack.c.l.b16 %v654
    %v687 = vunpack.c.l.b16 %v655
    %v688 = vunpack.c.l.b16 %v656
    %v689 = vunpack.c.l.b16 %v657
    %v690 = vunpack.c.l.b16 %v658
    %v691 = vunpack.c.l.b16 %v659
    %v692 = vunpack.c.l.b16 %v660
    %v693 = vunpack.c.l.b16 %v661
    %v694 = vunpack.c.l.b16 %v662
    %v695 = vunpack.c.l.b16 %v663
    %v696 = vunpack.c.l.b16 %v664
    %v697 = vunpack.c.l.b16 %v665
    %v698 = vunpack.c.l.b16 %v666
    %v699 = vpack.c.b16 %v684, %v683
    %v700 = vpack.c.b16 %v686, %v685
    %v701 = vpack.c.b16 %v688, %v687
    %v702 = vpack.c.b16 %v690, %v689
    %v703 = vpack.c.b16 %v692, %v691
    %v704 = vpack.c.b16 %v694, %v693
    %v705 = vpack.c.b16 %v696, %v695
    %v706 = vpack.c.b16 %v698, %v697
    %715 = vmatprep.subr.bf16.mxu0 0
    %716 = vmatpush1.bf16.msra.mxu0 %v706
    %717 = vmatprep.subr.bf16.mxu0 0
    %718 = vmatpush1.bf16.msra.mxu0 %v705
    %719 = vmatprep.subr.bf16.mxu0 0
    %720 = vmatpush1.bf16.msra.mxu0 %v704
    %721 = vmatprep.subr.bf16.mxu0 0
    %722 = vmatpush1.bf16.msra.mxu0 %v703
    %723 = vmatprep.subr.bf16.mxu0 0
    %724 = vmatpush1.bf16.msra.mxu0 %v702
    %725 = vmatprep.subr.bf16.mxu0 0
    %726 = vmatpush1.bf16.msra.mxu0 %v701
    %727 = vmatprep.subr.bf16.mxu0 0
    %728 = vmatpush1.bf16.msra.mxu0 %v700
    %729 = vmatprep.subr.bf16.mxu0 0
    %730 = vmatpush1.bf16.msra.mxu0 %v699
    %731 = vmatprep.subr.bf16.mxu0 0
    %732 = vmatpush2.bf16.msra.mxu0 0
    %733 = vmatprep.subr.bf16.mxu0 0
    %734 = vmatpush2.bf16.msra.mxu0 0
    %735 = vmatprep.subr.bf16.mxu0 0
    %736 = vmatpush2.bf16.msra.mxu0 0
    %737 = vmatprep.subr.bf16.mxu0 0
    %738 = vmatpush2.bf16.msra.mxu0 0
    %739 = vmatprep.subr.bf16.mxu0 0
    %740 = vmatpush2.bf16.msra.mxu0 0
    %741 = vmatprep.subr.bf16.mxu0 0
    %742 = vmatpush2.bf16.msra.mxu0 0
    %743 = vmatprep.subr.bf16.mxu0 0
    %744 = vmatpush2.bf16.msra.mxu0 0
    %745 = vmatprep.subr.bf16.mxu0 0
    %746 = vmatpush2.bf16.msra.mxu0 0
    %747 = vmatprep.mubr.bf16.mxu0 0
    %748 = vmatmul.mubr.bf16.gmra.mxu0 %v650
    %v749 = vpop.f32.mrf.mxu0
    %v750 = vadd.f32 0.0, %v749
    %v751 = vpop.f32.mrf.mxu0
    %v752 = vpop.f32.mrf.mxu0
    %v753 = vadd.f32 0.0, %v752
    %v754 = vpop.f32.mrf.mxu0
    %755 = vdwg.mxu0
    %v766 = vunpack.c.l.b16 %v640
    %v767 = vunpack.c.l.b16 %v641
    %v768 = vunpack.c.l.b16 %v642
    %v769 = vunpack.c.l.b16 %v643
    %v770 = vunpack.c.l.b16 %v644
    %v771 = vunpack.c.l.b16 %v645
    %v772 = vunpack.c.l.b16 %v646
    %v773 = vunpack.c.l.b16 %v647
    %v774 = vunpack.c.l.b16 %v648
    %v775 = vunpack.c.l.b16 %v649
    %v776 = vpack.c.b16 %v767, %v766
    %v777 = vpack.c.b16 %v769, %v768
    %v778 = vpack.c.b16 %v771, %v770
    %v779 = vpack.c.b16 %v773, %v772
    %v780 = vpack.c.b16 %v775, %v774
    %786 = vmatprep.subr.bf16.mxu0 0
    %787 = vmatpush1.bf16.msra.mxu0 0
    %788 = vmatprep.subr.bf16.mxu0 0
    %789 = vmatpush1.bf16.msra.mxu0 0
    %790 = vmatprep.subr.bf16.mxu0 0
    %791 = vmatpush1.bf16.msra.mxu0 0
    %792 = vmatprep.subr.bf16.mxu0 0
    %793 = vmatpush1.bf16.msra.mxu0 %v780
    %794 = vmatprep.subr.bf16.mxu0 0
    %795 = vmatpush1.bf16.msra.mxu0 %v779
    %796 = vmatprep.subr.bf16.mxu0 0
    %797 = vmatpush1.bf16.msra.mxu0 %v778
    %798 = vmatprep.subr.bf16.mxu0 0
    %799 = vmatpush1.bf16.msra.mxu0 %v777
    %800 = vmatprep.subr.bf16.mxu0 0
    %801 = vmatpush1.bf16.msra.mxu0 %v776
    %802 = vmatprep.subr.bf16.mxu0 0
    %803 = vmatpush2.bf16.msra.mxu0 0
    %804 = vmatprep.subr.bf16.mxu0 0
    %805 = vmatpush2.bf16.msra.mxu0 0
    %806 = vmatprep.subr.bf16.mxu0 0
    %807 = vmatpush2.bf16.msra.mxu0 0
    %808 = vmatprep.subr.bf16.mxu0 0
    %809 = vmatpush2.bf16.msra.mxu0 0
    %810 = vmatprep.subr.bf16.mxu0 0
    %811 = vmatpush2.bf16.msra.mxu0 0
    %812 = vmatprep.subr.bf16.mxu0 0
    %813 = vmatpush2.bf16.msra.mxu0 0
    %814 = vmatprep.subr.bf16.mxu0 0
    %815 = vmatpush2.bf16.msra.mxu0 0
    %816 = vmatprep.subr.bf16.mxu0 0
    %817 = vmatpush2.bf16.msra.mxu0 0
    %818 = vmatprep.mubr.bf16.mxu0 0
    %819 = vmatmul.mubr.bf16.gmra.mxu0 %v320
    %v820 = vpop.f32.mrf.mxu0
    %v821 = vadd.f32 %v750, %v820
    %v822 = vpop.f32.mrf.mxu0
    %v823 = vpop.f32.mrf.mxu0
    %v824 = vadd.f32 %v753, %v823
    %v825 = vpop.f32.mrf.mxu0
    %826 = vdwg.mxu0
    %v827 = vadd.f32 %v821, %v204
    %v828 = vadd.f32 %v824, %v204
    %v829 = vmax.f32 %v827, 0.0
    %v830 = vmax.f32 %v828, 0.0
    %v831 = vpack.c.bf16 %v830, %v829
    %v832 = vld [vmem:[#allocation17] sm:$0xf]
    %v833 = vld [vmem:[#allocation17 + $0x4] sm:$0xf]
    %v834 = vld [vmem:[#allocation17 + $0x8] sm:$0xf]
    %v835 = vld [vmem:[#allocation17 + $0xc] sm:$0xf]
    %v836 = vld [vmem:[#allocation17 + $0x10] sm:$0xf]
    %v837 = vld [vmem:[#allocation17 + $0x14] sm:$0xf]
    %v838 = vld [vmem:[#allocation17 + $0x18] sm:$0xf]
    %v839 = vld [vmem:[#allocation17 + $0x1c] sm:$0xf]
    %v840 = vld [vmem:[#allocation17 + $0x20] sm:$0xf]
    %v841 = vld [vmem:[#allocation17 + $0x24] sm:$0xf]
    %v842 = vld [vmem:[#allocation17 + $0x28] sm:$0xf]
    %v843 = vld [vmem:[#allocation17 + $0x2c] sm:$0xf]
    %v844 = vld [vmem:[#allocation17 + $0x30] sm:$0xf]
    %v845 = vld [vmem:[#allocation17 + $0x34] sm:$0xf]
    %v846 = vld [vmem:[#allocation17 + $0x38] sm:$0xf]
    %v847 = vld [vmem:[#allocation17 + $0x3c] sm:$0xf]
    %v864 = vunpack.c.l.b16 %v832
    %v865 = vunpack.c.l.b16 %v833
    %v866 = vunpack.c.l.b16 %v834
    %v867 = vunpack.c.l.b16 %v835
    %v868 = vunpack.c.l.b16 %v836
    %v869 = vunpack.c.l.b16 %v837
    %v870 = vunpack.c.l.b16 %v838
    %v871 = vunpack.c.l.b16 %v839
    %v872 = vunpack.c.l.b16 %v840
    %v873 = vunpack.c.l.b16 %v841
    %v874 = vunpack.c.l.b16 %v842
    %v875 = vunpack.c.l.b16 %v843
    %v876 = vunpack.c.l.b16 %v844
    %v877 = vunpack.c.l.b16 %v845
    %v878 = vunpack.c.l.b16 %v846
    %v879 = vunpack.c.l.b16 %v847
    %v880 = vpack.c.b16 %v865, %v864
    %v881 = vpack.c.b16 %v867, %v866
    %v882 = vpack.c.b16 %v869, %v868
    %v883 = vpack.c.b16 %v871, %v870
    %v884 = vpack.c.b16 %v873, %v872
    %v885 = vpack.c.b16 %v875, %v874
    %v886 = vpack.c.b16 %v877, %v876
    %v887 = vpack.c.b16 %v879, %v878
    %896 = vmatprep.subr.bf16.mxu0 0
    %897 = vmatpush1.bf16.msra.mxu0 %v887
    %898 = vmatprep.subr.bf16.mxu0 0
    %899 = vmatpush1.bf16.msra.mxu0 %v886
    %900 = vmatprep.subr.bf16.mxu0 0
    %901 = vmatpush1.bf16.msra.mxu0 %v885
    %902 = vmatprep.subr.bf16.mxu0 0
    %903 = vmatpush1.bf16.msra.mxu0 %v884
    %904 = vmatprep.subr.bf16.mxu0 0
    %905 = vmatpush1.bf16.msra.mxu0 %v883
    %906 = vmatprep.subr.bf16.mxu0 0
    %907 = vmatpush1.bf16.msra.mxu0 %v882
    %908 = vmatprep.subr.bf16.mxu0 0
    %909 = vmatpush1.bf16.msra.mxu0 %v881
    %910 = vmatprep.subr.bf16.mxu0 0
    %911 = vmatpush1.bf16.msra.mxu0 %v880
    %912 = vmatprep.subr.bf16.mxu0 0
    %913 = vmatpush2.bf16.msra.mxu0 0
    %914 = vmatprep.subr.bf16.mxu0 0
    %915 = vmatpush2.bf16.msra.mxu0 0
    %916 = vmatprep.subr.bf16.mxu0 0
    %917 = vmatpush2.bf16.msra.mxu0 0
    %918 = vmatprep.subr.bf16.mxu0 0
    %919 = vmatpush2.bf16.msra.mxu0 0
    %920 = vmatprep.subr.bf16.mxu0 0
    %921 = vmatpush2.bf16.msra.mxu0 0
    %922 = vmatprep.subr.bf16.mxu0 0
    %923 = vmatpush2.bf16.msra.mxu0 0
    %924 = vmatprep.subr.bf16.mxu0 0
    %925 = vmatpush2.bf16.msra.mxu0 0
    %926 = vmatprep.subr.bf16.mxu0 0
    %927 = vmatpush2.bf16.msra.mxu0 0
    %928 = vmatprep.mubr.bf16.mxu0 0
    %929 = vmatmul.mubr.bf16.gmra.mxu0 %v831
    %v930 = vpop.f32.mrf.mxu0
    %v931 = vadd.f32 %v205, %v930
    %v932 = vpop.f32.mrf.mxu0
    %v933 = vpop.f32.mrf.mxu0
    %v934 = vadd.f32 %v205, %v933
    %v935 = vpop.f32.mrf.mxu0
    %936 = vdwg.mxu0
    %v937 = vmax.f32 %v931, 0.0
    %v938 = vmax.f32 %v934, 0.0
    %v939 = vpack.c.bf16 %v938, %v937
    %v940 = vld [vmem:[#allocation19] sm:$0xf]
    %v941 = vld [vmem:[#allocation19 + $0x4] sm:$0xf]
    %v942 = vld [vmem:[#allocation19 + $0x8] sm:$0xf]
    %v943 = vld [vmem:[#allocation19 + $0xc] sm:$0xf]
    %v944 = vld [vmem:[#allocation19 + $0x10] sm:$0xf]
    %v945 = vld [vmem:[#allocation19 + $0x14] sm:$0xf]
    %v946 = vld [vmem:[#allocation19 + $0x18] sm:$0xf]
    %v947 = vld [vmem:[#allocation19 + $0x1c] sm:$0xf]
    %v948 = vld [vmem:[#allocation19 + $0x20] sm:$0xf]
    %v949 = vld [vmem:[#allocation19 + $0x24] sm:$0xf]
    %v950 = vld [vmem:[#allocation19 + $0x28] sm:$0xf]
    %v951 = vld [vmem:[#allocation19 + $0x2c] sm:$0xf]
    %v952 = vld [vmem:[#allocation19 + $0x30] sm:$0xf]
    %v953 = vld [vmem:[#allocation19 + $0x34] sm:$0xf]
    %v954 = vld [vmem:[#allocation19 + $0x38] sm:$0xf]
    %v955 = vld [vmem:[#allocation19 + $0x3c] sm:$0xf]
    %v972 = vunpack.c.l.b16 %v940
    %v973 = vunpack.c.l.b16 %v941
    %v974 = vunpack.c.l.b16 %v942
    %v975 = vunpack.c.l.b16 %v943
    %v976 = vunpack.c.l.b16 %v944
    %v977 = vunpack.c.l.b16 %v945
    %v978 = vunpack.c.l.b16 %v946
    %v979 = vunpack.c.l.b16 %v947
    %v980 = vunpack.c.l.b16 %v948
    %v981 = vunpack.c.l.b16 %v949
    %v982 = vunpack.c.l.b16 %v950
    %v983 = vunpack.c.l.b16 %v951
    %v984 = vunpack.c.l.b16 %v952
    %v985 = vunpack.c.l.b16 %v953
    %v986 = vunpack.c.l.b16 %v954
    %v987 = vunpack.c.l.b16 %v955
    %v988 = vpack.c.b16 %v973, %v972
    %v989 = vpack.c.b16 %v975, %v974
    %v990 = vpack.c.b16 %v977, %v976
    %v991 = vpack.c.b16 %v979, %v978
    %v992 = vpack.c.b16 %v981, %v980
    %v993 = vpack.c.b16 %v983, %v982
    %v994 = vpack.c.b16 %v985, %v984
    %v995 = vpack.c.b16 %v987, %v986
    %1004 = vmatprep.subr.bf16.mxu0 0
    %1005 = vmatpush1.bf16.msra.mxu0 %v995
    %1006 = vmatprep.subr.bf16.mxu0 0
    %1007 = vmatpush1.bf16.msra.mxu0 %v994
    %1008 = vmatprep.subr.bf16.mxu0 0
    %1009 = vmatpush1.bf16.msra.mxu0 %v993
    %1010 = vmatprep.subr.bf16.mxu0 0
    %1011 = vmatpush1.bf16.msra.mxu0 %v992
    %1012 = vmatprep.subr.bf16.mxu0 0
    %1013 = vmatpush1.bf16.msra.mxu0 %v991
    %1014 = vmatprep.subr.bf16.mxu0 0
    %1015 = vmatpush1.bf16.msra.mxu0 %v990
    %1016 = vmatprep.subr.bf16.mxu0 0
    %1017 = vmatpush1.bf16.msra.mxu0 %v989
    %1018 = vmatprep.subr.bf16.mxu0 0
    %1019 = vmatpush1.bf16.msra.mxu0 %v988
    %1020 = vmatprep.subr.bf16.mxu0 0
    %1021 = vmatpush2.bf16.msra.mxu0 0
    %1022 = vmatprep.subr.bf16.mxu0 0
    %1023 = vmatpush2.bf16.msra.mxu0 0
    %1024 = vmatprep.subr.bf16.mxu0 0
    %1025 = vmatpush2.bf16.msra.mxu0 0
    %1026 = vmatprep.subr.bf16.mxu0 0
    %1027 = vmatpush2.bf16.msra.mxu0 0
    %1028 = vmatprep.subr.bf16.mxu0 0
    %1029 = vmatpush2.bf16.msra.mxu0 0
    %1030 = vmatprep.subr.bf16.mxu0 0
    %1031 = vmatpush2.bf16.msra.mxu0 0
    %1032 = vmatprep.subr.bf16.mxu0 0
    %1033 = vmatpush2.bf16.msra.mxu0 0
    %1034 = vmatprep.subr.bf16.mxu0 0
    %1035 = vmatpush2.bf16.msra.mxu0 0
    %1036 = vmatprep.mubr.bf16.mxu0 0
    %1037 = vmatmul.mubr.bf16.gmra.mxu0 %v939
    %v1038 = vpop.f32.mrf.mxu0
    %v1039 = vadd.f32 %v206, %v1038
    %v1040 = vpop.f32.mrf.mxu0
    %v1041 = vpop.f32.mrf.mxu0
    %v1042 = vadd.f32 %v206, %v1041
    %v1043 = vpop.f32.mrf.mxu0
    %1044 = vdwg.mxu0
    %1045 = vst [vmem:[#allocation20] sm:$0xff] %v1039
    %1046 = vst [vmem:[#allocation20 + $0x8] sm:$0xff] %v1042
    %1047 = vst [vmem:[#allocation21] sm:$0xff] %v618
    %1048 = vst [vmem:[#allocation21 + $0x8] sm:$0xff] %v622
    %1049 = vst [vmem:[#allocation23] sm:$0xff] %v631
    %1050 = vst [vmem:[#allocation23 + $0x8] sm:$0xff] %v633
    // Predicated region
    $region94: #{tpu_custom_call.1} parent=1 // pred_check
      _
    $region95: #{tpu_custom_call.1} parent=1 // pred_check_branch
      %1052 = sbr.rel (0) target = $region97
    $region96: #{tpu_custom_call.1} parent=1 // pred_region
      %s1054 = ssub.s32 256, 256
      %1055 = vsyncadd [#allocation4], %s1054
      %s1056 = sshll.u32 [#allocation20], 4
      %s1057 = int_to_ptr.vmem [resolvable:$true] %s1056
      %1062 = dma.vmem_to_hbm [thread:$0]  %s1057, 256, %s12, [#allocation4], 128, 128, 8
    $region97: #{tpu_custom_call.1} parent=1 // pred_fallthru
      _
    // Predicated region
    $region98: #{tpu_custom_call.1} parent=1 // pred_check
      _
    $region99: #{tpu_custom_call.1} parent=1 // pred_check_branch
      %1064 = sbr.rel (0) target = $region101
    $region100: #{tpu_custom_call.1} parent=1 // pred_region
      %s1066 = ssub.s32 256, 256
      %1067 = vsyncadd [#allocation22], %s1066
      %s1068 = sshll.u32 [#allocation21], 4
      %s1069 = int_to_ptr.vmem [resolvable:$true] %s1068
      %1074 = dma.vmem_to_hbm [thread:$0]  %s1069, 256, %s13, [#allocation22], 128, 128, 8
    $region101: #{tpu_custom_call.1} parent=1 // pred_fallthru
      _
    // Predicated region
    $region102: #{tpu_custom_call.1} parent=1 // pred_check
      _
    $region103: #{tpu_custom_call.1} parent=1 // pred_check_branch
      %1076 = sbr.rel (0) target = $region105
    $region104: #{tpu_custom_call.1} parent=1 // pred_region
      %s1078 = ssub.s32 256, 256
      %1079 = vsyncadd [#allocation22], %s1078
      %s1080 = sshll.u32 [#allocation23], 4
      %s1081 = int_to_ptr.vmem [resolvable:$true] %s1080
      %1086 = dma.vmem_to_hbm [thread:$0]  %s1081, 256, %s14, [#allocation22], 128, 128, 8
    $region105: #{tpu_custom_call.1} parent=1 // pred_fallthru
      _
    // Predicated region
    $region106: #{tpu_custom_call.1} parent=1 // pred_check
      _
    $region107: #{tpu_custom_call.1} parent=1 // pred_check_branch
      %1088 = sbr.rel (0) target = $region109
    $region108: #{tpu_custom_call.1} parent=1 // pred_region
      %1089 = dma.done [#allocation4], 256
    $region109: #{tpu_custom_call.1} parent=1 // pred_fallthru
      _
    // Predicated region
    $region110: #{tpu_custom_call.1} parent=1 // pred_check
      _
    $region111: #{tpu_custom_call.1} parent=1 // pred_check_branch
      %1091 = sbr.rel (0) target = $region113
    $region112: #{tpu_custom_call.1} parent=1 // pred_region
      %1092 = dma.done [#allocation22], 256
    $region113: #{tpu_custom_call.1} parent=1 // pred_fallthru
      _
    // Predicated region
    $region114: #{tpu_custom_call.1} parent=1 // pred_check
      _
    $region115: #{tpu_custom_call.1} parent=1 // pred_check_branch
      %1094 = sbr.rel (0) target = $region117
    $region116: #{tpu_custom_call.1} parent=1 // pred_region
      %1095 = dma.done [#allocation22], 256
    $region117: #{tpu_custom_call.1} parent=1 // pred_fallthru
      _
    %1096 = vsyncpa [#allocation3], 1
    %1097 = vsyncpa [#allocation6], 1
    %1098 = vsyncpa [#allocation9], 1
    %1099 = vsyncpa [#allocation12], 1
    %1100 = vsyncpa [#allocation15], 1
    %1101 = vsyncpa [#allocation18], 1
    %1102 = vsyncpa [#allocation4], 1
    %1103 = vsyncpa [#allocation22], 1

</llo_original>
